<compile_context>
chip_gen: v7x
topology: tpu7x:2x2x1
jax: 0.10.0
libtpu: 0.0.40
codegen_flags: <defaults>
</compile_context>

<pallas_src>
import jax
import jax.numpy as jnp
from jax.experimental import pallas as pl
from jax.experimental.pallas import tpu as pltpu

IN_FEATURES = 32 * 32 * 3       # 3072 (already a multiple of 128)
L1, L2, L3 = 120, 80, 10        # logical layer widths
LP = 128                        # lane-padded width for every hidden/output dim
BN_EPS = 1e-5


def _fc_bn_relu(h_bf16, w_ref, b_ref, g_ref, beta_ref):
    """Linear (bf16 MXU, f32 acc) -> BatchNorm1d (train mode) -> ReLU, in f32."""
    z = jnp.dot(h_bf16, w_ref[...], preferred_element_type=jnp.float32)
    z = z + b_ref[...]
    # Biased per-feature batch statistics (BatchNorm1d training mode).
    mean = jnp.mean(z, axis=0, keepdims=True)
    var = jnp.mean((z - mean) * (z - mean), axis=0, keepdims=True)
    # Fold BN into one scale/shift; rsqrt lowers to the EUP slot (free).
    scale = g_ref[...] * jax.lax.rsqrt(var + BN_EPS)
    shift = beta_ref[...] - mean * scale
    # Dropout(p=0) is the identity and is omitted.
    return jnp.maximum(z * scale + shift, 0.0)


def mynet_fc_kernel(x_ref,
                    w1_ref, b1_ref, g1_ref, be1_ref,
                    w2_ref, b2_ref, g2_ref, be2_ref,
                    w3_ref, b3_ref, g3_ref, be3_ref,
                    o_ref):
    h = x_ref[...].astype(jnp.bfloat16)                       # MXU-native lhs
    h = _fc_bn_relu(h, w1_ref, b1_ref, g1_ref, be1_ref)
    h = _fc_bn_relu(h.astype(jnp.bfloat16), w2_ref, b2_ref, g2_ref, be2_ref)
    h = _fc_bn_relu(h.astype(jnp.bfloat16), w3_ref, b3_ref, g3_ref, be3_ref)
    o_ref[...] = h.astype(o_ref.dtype)                        # lane-dense [B,128] store


@jax.jit
def mynet_fc_forward(x, packed):
    """x: [B, 3072] float32.  packed: dict from pack_params().  Returns [B, 10] f32."""
    B = x.shape[0]
    # Whole batch stays VMEM-resident because BN needs global batch statistics.
    assert B * IN_FEATURES * 4 <= (24 << 20), "batch too large for whole-batch-resident kernel"

    args = (
        x,
        packed["w1"], packed["b1"], packed["g1"], packed["be1"],
        packed["w2"], packed["b2"], packed["g2"], packed["be2"],
        packed["w3"], packed["b3"], packed["g3"], packed["be3"],
    )
    full = lambda a: pl.BlockSpec(a.shape, lambda: (0,) * a.ndim)

    # Size the scoped VMEM limit from the real footprint (stay << 64 MiB for v7x).
    footprint = sum(int(a.size) * a.dtype.itemsize for a in args) + B * LP * 4
    vmem_limit = int(min(max(2 * footprint + (4 << 20), 8 << 20), 48 << 20))

    out = pl.pallas_call(
        mynet_fc_kernel,
        out_shape=jax.ShapeDtypeStruct((B, LP), jnp.float32),
        in_specs=[full(a) for a in args],
        out_specs=pl.BlockSpec((B, LP), lambda: (0, 0)),
        compiler_params=pltpu.CompilerParams(vmem_limit_bytes=vmem_limit),
    )(*args)
    return out[:, :L3]


def init_params(key):
    """Logical (unpadded) f32 params mimicking nn.Linear / nn.BatchNorm1d defaults.

    Weights are stored as [in, out] (transposed from PyTorch's [out, in]).
    """
    ks = jax.random.split(key, 6)

    def linear(kw, kb, fan_in, fan_out):
        bound = 1.0 / (fan_in ** 0.5)
        w = jax.random.uniform(kw, (fan_in, fan_out), jnp.float32, -bound, bound)
        b = jax.random.uniform(kb, (fan_out,), jnp.float32, -bound, bound)
        return w, b

    w1, b1 = linear(ks[0], ks[1], IN_FEATURES, L1)
    w2, b2 = linear(ks[2], ks[3], L1, L2)
    w3, b3 = linear(ks[4], ks[5], L2, L3)
    ones = lambda n: jnp.ones((n,), jnp.float32)
    zeros = lambda n: jnp.zeros((n,), jnp.float32)
    return dict(
        w1=w1, b1=b1, g1=ones(L1), be1=zeros(L1),
        w2=w2, b2=b2, g2=ones(L2), be2=zeros(L2),
        w3=w3, b3=b3, g3=ones(L3), be3=zeros(L3),
    )


def pack_params(p):
    """Pad every feature dim to 128 lanes; weights -> bf16, BN/bias rows -> [1,128] f32.

    Padded weight/bias/gamma/beta entries are zero, so padded lanes are exactly
    0 through the whole net and never contaminate the logical [:, :10] slice.
    """
    def pad_w(w, rows, cols):
        out = jnp.zeros((rows, cols), jnp.float32).at[: w.shape[0], : w.shape[1]].set(w)
        return out.astype(jnp.bfloat16)

    def pad_v(v, cols):
        return jnp.zeros((1, cols), jnp.float32).at[0, : v.shape[0]].set(v)

    return dict(
        w1=pad_w(p["w1"], IN_FEATURES, LP), b1=pad_v(p["b1"], LP),
        g1=pad_v(p["g1"], LP), be1=pad_v(p["be1"], LP),
        w2=pad_w(p["w2"], LP, LP), b2=pad_v(p["b2"], LP),
        g2=pad_v(p["g2"], LP), be2=pad_v(p["be2"], LP),
        w3=pad_w(p["w3"], LP, LP), b3=pad_v(p["b3"], LP),
        g3=pad_v(p["g3"], LP), be3=pad_v(p["be3"], LP),
    )


def reference_forward(x, p):
    """Pure-JAX f32 reference with the module's semantics (sanity check)."""
    def layer(h, w, b, g, be):
        z = h @ w + b
        m = z.mean(0, keepdims=True)
        v = ((z - m) ** 2).mean(0, keepdims=True)
        return jnp.maximum((z - m) / jnp.sqrt(v + BN_EPS) * g + be, 0.0)
    h = layer(x, p["w1"], p["b1"], p["g1"], p["be1"])
    h = layer(h, p["w2"], p["b2"], p["g2"], p["be2"])
    return layer(h, p["w3"], p["b3"], p["g3"], p["be3"])


if __name__ == "__main__":
    key = jax.random.PRNGKey(0)
    kx, kp = jax.random.split(key)
    B = 8
    x = jax.random.normal(kx, (B, IN_FEATURES), jnp.float32)
    params = init_params(kp)
    packed = pack_params(params)

    out = mynet_fc_forward(x, packed)
    out = jax.block_until_ready(out)

    ref = reference_forward(x, params)
    assert out.shape == (B, L3)
    # bf16 MXU matmuls vs. the f32 reference -> loose tolerance.
    assert jnp.allclose(out, ref, atol=5e-2, rtol=5e-2), "mismatch vs reference"
    print("KERNEL_OK")
</pallas_src>

<mosaic_0001>
module attributes {stable_mosaic.version = 11 : i64} {
  func.func @mynet_fc_kernel(%arg0: memref<8x3072xf32, #tpu.memory_space<vmem>>, %arg1: memref<3072x128xbf16, #tpu.memory_space<vmem>>, %arg2: memref<1x128xf32, #tpu.memory_space<vmem>>, %arg3: memref<1x128xf32, #tpu.memory_space<vmem>>, %arg4: memref<1x128xf32, #tpu.memory_space<vmem>>, %arg5: memref<128x128xbf16, #tpu.memory_space<vmem>>, %arg6: memref<1x128xf32, #tpu.memory_space<vmem>>, %arg7: memref<1x128xf32, #tpu.memory_space<vmem>>, %arg8: memref<1x128xf32, #tpu.memory_space<vmem>>, %arg9: memref<128x128xbf16, #tpu.memory_space<vmem>>, %arg10: memref<1x128xf32, #tpu.memory_space<vmem>>, %arg11: memref<1x128xf32, #tpu.memory_space<vmem>>, %arg12: memref<1x128xf32, #tpu.memory_space<vmem>>, %arg13: memref<8x128xf32, #tpu.memory_space<vmem>>) attributes {dimension_semantics = [], scalar_prefetch = 0 : i64, scratch_operands = 0 : i64, tpu.core_type = #tpu.core_type<tc>} {
    %c0 = arith.constant 0 : index
    %c0_0 = arith.constant 0 : index
    %0 = vector.load %arg0[%c0, %c0_0] : memref<8x3072xf32, #tpu.memory_space<vmem>>, vector<8x3072xf32>
    %1 = arith.truncf %0 : vector<8x3072xf32> to vector<8x3072xbf16>
    %c0_1 = arith.constant 0 : index
    %c0_2 = arith.constant 0 : index
    %2 = vector.load %arg1[%c0_1, %c0_2] : memref<3072x128xbf16, #tpu.memory_space<vmem>>, vector<3072x128xbf16>
    %cst = arith.constant dense<0.000000e+00> : vector<8x128xf32>
    %3 = tpu.matmul %1, %2, %cst {dimension_numbers = #tpu.dot_dimension_numbers<[1], [0], [0], [1], [0, 0, 1, 1], [], []>} : vector<8x3072xbf16>, vector<3072x128xbf16>, vector<8x128xf32> -> vector<8x128xf32>
    %c0_3 = arith.constant 0 : index
    %c0_4 = arith.constant 0 : index
    %4 = vector.load %arg2[%c0_3, %c0_4] : memref<1x128xf32, #tpu.memory_space<vmem>>, vector<1x128xf32>
    %5 = vector.broadcast %4 : vector<1x128xf32> to vector<8x128xf32>
    %6 = arith.addf %3, %5 : vector<8x128xf32>
    %cst_5 = arith.constant dense<0.000000e+00> : vector<128xf32>
    %7 = vector.multi_reduction <add>, %6, %cst_5 [0] : vector<8x128xf32> to vector<128xf32>
    %8 = vector.shape_cast %7 : vector<128xf32> to vector<1x128xf32>
    %cst_6 = arith.constant 8.000000e+00 : f32
    %9 = vector.broadcast %cst_6 : f32 to vector<1x128xf32>
    %10 = arith.divf %8, %9 : vector<1x128xf32>
    %11 = vector.broadcast %10 : vector<1x128xf32> to vector<8x128xf32>
    %12 = arith.subf %6, %11 : vector<8x128xf32>
    %13 = vector.broadcast %10 : vector<1x128xf32> to vector<8x128xf32>
    %14 = arith.subf %6, %13 : vector<8x128xf32>
    %15 = arith.mulf %12, %14 : vector<8x128xf32>
    %cst_7 = arith.constant dense<0.000000e+00> : vector<128xf32>
    %16 = vector.multi_reduction <add>, %15, %cst_7 [0] : vector<8x128xf32> to vector<128xf32>
    %17 = vector.shape_cast %16 : vector<128xf32> to vector<1x128xf32>
    %cst_8 = arith.constant 8.000000e+00 : f32
    %18 = vector.broadcast %cst_8 : f32 to vector<1x128xf32>
    %19 = arith.divf %17, %18 : vector<1x128xf32>
    %c0_9 = arith.constant 0 : index
    %c0_10 = arith.constant 0 : index
    %20 = vector.load %arg3[%c0_9, %c0_10] : memref<1x128xf32, #tpu.memory_space<vmem>>, vector<1x128xf32>
    %cst_11 = arith.constant 9.99999974E-6 : f32
    %21 = vector.broadcast %cst_11 : f32 to vector<1x128xf32>
    %22 = arith.addf %19, %21 : vector<1x128xf32>
    %23 = math.rsqrt %22 : vector<1x128xf32>
    %24 = arith.mulf %20, %23 : vector<1x128xf32>
    %c0_12 = arith.constant 0 : index
    %c0_13 = arith.constant 0 : index
    %25 = vector.load %arg4[%c0_12, %c0_13] : memref<1x128xf32, #tpu.memory_space<vmem>>, vector<1x128xf32>
    %26 = arith.mulf %10, %24 : vector<1x128xf32>
    %27 = arith.subf %25, %26 : vector<1x128xf32>
    %28 = vector.broadcast %24 : vector<1x128xf32> to vector<8x128xf32>
    %29 = arith.mulf %6, %28 : vector<8x128xf32>
    %30 = vector.broadcast %27 : vector<1x128xf32> to vector<8x128xf32>
    %31 = arith.addf %29, %30 : vector<8x128xf32>
    %cst_14 = arith.constant 0.000000e+00 : f32
    %32 = vector.broadcast %cst_14 : f32 to vector<8x128xf32>
    %33 = arith.maximumf %31, %32 : vector<8x128xf32>
    %34 = arith.truncf %33 : vector<8x128xf32> to vector<8x128xbf16>
    %c0_15 = arith.constant 0 : index
    %c0_16 = arith.constant 0 : index
    %35 = vector.load %arg5[%c0_15, %c0_16] : memref<128x128xbf16, #tpu.memory_space<vmem>>, vector<128x128xbf16>
    %cst_17 = arith.constant dense<0.000000e+00> : vector<8x128xf32>
    %36 = tpu.matmul %34, %35, %cst_17 {dimension_numbers = #tpu.dot_dimension_numbers<[1], [0], [0], [1], [0, 0, 1, 1], [], []>} : vector<8x128xbf16>, vector<128x128xbf16>, vector<8x128xf32> -> vector<8x128xf32>
    %c0_18 = arith.constant 0 : index
    %c0_19 = arith.constant 0 : index
    %37 = vector.load %arg6[%c0_18, %c0_19] : memref<1x128xf32, #tpu.memory_space<vmem>>, vector<1x128xf32>
    %38 = vector.broadcast %37 : vector<1x128xf32> to vector<8x128xf32>
    %39 = arith.addf %36, %38 : vector<8x128xf32>
    %cst_20 = arith.constant dense<0.000000e+00> : vector<128xf32>
    %40 = vector.multi_reduction <add>, %39, %cst_20 [0] : vector<8x128xf32> to vector<128xf32>
    %41 = vector.shape_cast %40 : vector<128xf32> to vector<1x128xf32>
    %cst_21 = arith.constant 8.000000e+00 : f32
    %42 = vector.broadcast %cst_21 : f32 to vector<1x128xf32>
    %43 = arith.divf %41, %42 : vector<1x128xf32>
    %44 = vector.broadcast %43 : vector<1x128xf32> to vector<8x128xf32>
    %45 = arith.subf %39, %44 : vector<8x128xf32>
    %46 = vector.broadcast %43 : vector<1x128xf32> to vector<8x128xf32>
    %47 = arith.subf %39, %46 : vector<8x128xf32>
    %48 = arith.mulf %45, %47 : vector<8x128xf32>
    %cst_22 = arith.constant dense<0.000000e+00> : vector<128xf32>
    %49 = vector.multi_reduction <add>, %48, %cst_22 [0] : vector<8x128xf32> to vector<128xf32>
    %50 = vector.shape_cast %49 : vector<128xf32> to vector<1x128xf32>
    %cst_23 = arith.constant 8.000000e+00 : f32
    %51 = vector.broadcast %cst_23 : f32 to vector<1x128xf32>
    %52 = arith.divf %50, %51 : vector<1x128xf32>
    %c0_24 = arith.constant 0 : index
    %c0_25 = arith.constant 0 : index
    %53 = vector.load %arg7[%c0_24, %c0_25] : memref<1x128xf32, #tpu.memory_space<vmem>>, vector<1x128xf32>
    %cst_26 = arith.constant 9.99999974E-6 : f32
    %54 = vector.broadcast %cst_26 : f32 to vector<1x128xf32>
    %55 = arith.addf %52, %54 : vector<1x128xf32>
    %56 = math.rsqrt %55 : vector<1x128xf32>
    %57 = arith.mulf %53, %56 : vector<1x128xf32>
    %c0_27 = arith.constant 0 : index
    %c0_28 = arith.constant 0 : index
    %58 = vector.load %arg8[%c0_27, %c0_28] : memref<1x128xf32, #tpu.memory_space<vmem>>, vector<1x128xf32>
    %59 = arith.mulf %43, %57 : vector<1x128xf32>
    %60 = arith.subf %58, %59 : vector<1x128xf32>
    %61 = vector.broadcast %57 : vector<1x128xf32> to vector<8x128xf32>
    %62 = arith.mulf %39, %61 : vector<8x128xf32>
    %63 = vector.broadcast %60 : vector<1x128xf32> to vector<8x128xf32>
    %64 = arith.addf %62, %63 : vector<8x128xf32>
    %cst_29 = arith.constant 0.000000e+00 : f32
    %65 = vector.broadcast %cst_29 : f32 to vector<8x128xf32>
    %66 = arith.maximumf %64, %65 : vector<8x128xf32>
    %67 = arith.truncf %66 : vector<8x128xf32> to vector<8x128xbf16>
    %c0_30 = arith.constant 0 : index
    %c0_31 = arith.constant 0 : index
    %68 = vector.load %arg9[%c0_30, %c0_31] : memref<128x128xbf16, #tpu.memory_space<vmem>>, vector<128x128xbf16>
    %cst_32 = arith.constant dense<0.000000e+00> : vector<8x128xf32>
    %69 = tpu.matmul %67, %68, %cst_32 {dimension_numbers = #tpu.dot_dimension_numbers<[1], [0], [0], [1], [0, 0, 1, 1], [], []>} : vector<8x128xbf16>, vector<128x128xbf16>, vector<8x128xf32> -> vector<8x128xf32>
    %c0_33 = arith.constant 0 : index
    %c0_34 = arith.constant 0 : index
    %70 = vector.load %arg10[%c0_33, %c0_34] : memref<1x128xf32, #tpu.memory_space<vmem>>, vector<1x128xf32>
    %71 = vector.broadcast %70 : vector<1x128xf32> to vector<8x128xf32>
    %72 = arith.addf %69, %71 : vector<8x128xf32>
    %cst_35 = arith.constant dense<0.000000e+00> : vector<128xf32>
    %73 = vector.multi_reduction <add>, %72, %cst_35 [0] : vector<8x128xf32> to vector<128xf32>
    %74 = vector.shape_cast %73 : vector<128xf32> to vector<1x128xf32>
    %cst_36 = arith.constant 8.000000e+00 : f32
    %75 = vector.broadcast %cst_36 : f32 to vector<1x128xf32>
    %76 = arith.divf %74, %75 : vector<1x128xf32>
    %77 = vector.broadcast %76 : vector<1x128xf32> to vector<8x128xf32>
    %78 = arith.subf %72, %77 : vector<8x128xf32>
    %79 = vector.broadcast %76 : vector<1x128xf32> to vector<8x128xf32>
    %80 = arith.subf %72, %79 : vector<8x128xf32>
    %81 = arith.mulf %78, %80 : vector<8x128xf32>
    %cst_37 = arith.constant dense<0.000000e+00> : vector<128xf32>
    %82 = vector.multi_reduction <add>, %81, %cst_37 [0] : vector<8x128xf32> to vector<128xf32>
    %83 = vector.shape_cast %82 : vector<128xf32> to vector<1x128xf32>
    %cst_38 = arith.constant 8.000000e+00 : f32
    %84 = vector.broadcast %cst_38 : f32 to vector<1x128xf32>
    %85 = arith.divf %83, %84 : vector<1x128xf32>
    %c0_39 = arith.constant 0 : index
    %c0_40 = arith.constant 0 : index
    %86 = vector.load %arg11[%c0_39, %c0_40] : memref<1x128xf32, #tpu.memory_space<vmem>>, vector<1x128xf32>
    %cst_41 = arith.constant 9.99999974E-6 : f32
    %87 = vector.broadcast %cst_41 : f32 to vector<1x128xf32>
    %88 = arith.addf %85, %87 : vector<1x128xf32>
    %89 = math.rsqrt %88 : vector<1x128xf32>
    %90 = arith.mulf %86, %89 : vector<1x128xf32>
    %c0_42 = arith.constant 0 : index
    %c0_43 = arith.constant 0 : index
    %91 = vector.load %arg12[%c0_42, %c0_43] : memref<1x128xf32, #tpu.memory_space<vmem>>, vector<1x128xf32>
    %92 = arith.mulf %76, %90 : vector<1x128xf32>
    %93 = arith.subf %91, %92 : vector<1x128xf32>
    %94 = vector.broadcast %90 : vector<1x128xf32> to vector<8x128xf32>
    %95 = arith.mulf %72, %94 : vector<8x128xf32>
    %96 = vector.broadcast %93 : vector<1x128xf32> to vector<8x128xf32>
    %97 = arith.addf %95, %96 : vector<8x128xf32>
    %cst_44 = arith.constant 0.000000e+00 : f32
    %98 = vector.broadcast %cst_44 : f32 to vector<8x128xf32>
    %99 = arith.maximumf %97, %98 : vector<8x128xf32>
    %c0_45 = arith.constant 0 : index
    %c0_46 = arith.constant 0 : index
    %100 = vector.load %arg13[%c0_45, %c0_46] : memref<8x128xf32, #tpu.memory_space<vmem>>, vector<8x128xf32>
    tpu.vector_store %arg13[%c0_45, %c0_46], %99 {strides = array<i32>} : memref<8x128xf32, #tpu.memory_space<vmem>>, vector<8x128xf32>,
    return
  }
}

</mosaic_0001>

<llo_original>
// kernel: mynet_fc_forward.1
$region0: #{mynet_fc_forward.1}
  #allocation0 [shape = 'u32[]', space=smem, size = 0x4, offset = 0x4, fixed_abs, tag = 'smem constant byte address 0x4 - core index']
  #allocation1 [shape = 'u32[144,128]{1,0:T(1,128)}', space=vmem, size = 0x12000, scoped, tag = 'internal scratch']
  %s0 = inlined_call_operand.hbm [shape: f32[8,3072], index: 0, kind: input, shape index: {}]
  %s1 = inlined_call_operand.hbm [shape: bf16[3072,128], index: 1, kind: input, shape index: {}]
  %s2 = inlined_call_operand.vmem [shape: f32[1,128], index: 2, kind: input, shape index: {}]
  %s3 = inlined_call_operand.vmem [shape: f32[1,128], index: 3, kind: input, shape index: {}]
  %s4 = inlined_call_operand.vmem [shape: f32[1,128], index: 4, kind: input, shape index: {}]
  %s5 = inlined_call_operand.hbm [shape: bf16[128,128], index: 5, kind: input, shape index: {}]
  %s6 = inlined_call_operand.vmem [shape: f32[1,128], index: 6, kind: input, shape index: {}]
  %s7 = inlined_call_operand.vmem [shape: f32[1,128], index: 7, kind: input, shape index: {}]
  %s8 = inlined_call_operand.vmem [shape: f32[1,128], index: 8, kind: input, shape index: {}]
  %s9 = inlined_call_operand.hbm [shape: bf16[128,128], index: 9, kind: input, shape index: {}]
  %s10 = inlined_call_operand.vmem [shape: f32[1,128], index: 10, kind: input, shape index: {}]
  %s11 = inlined_call_operand.vmem [shape: f32[1,128], index: 11, kind: input, shape index: {}]
  %s12 = inlined_call_operand.vmem [shape: f32[1,128], index: 12, kind: input, shape index: {}]
  %s13 = inlined_call_operand.hbm [shape: f32[8,128], index: 13, kind: output, shape index: {}]
  %s14 = sld [smem:[#allocation0]]
  $region78: #{mynet_fc_forward.1} parent=0
    _
  %s16 = ssub.s32 1, %s14
  %s17 = scalar_select 0, %s16, %s14
  $region1: #{mynet_fc_forward.1} parent=0
    #allocation2 [shape = 'u8[98304]{0}', space=vmem, size = 0x18000, scoped, tag = 'input window, operand 0, single buffered']
    #allocation3 [shape = 's32[1]{0}', space=sflag, size = 0x4, scoped, tag = 'scoped memory for mynet_fc_forward.1']
    #allocation4 [shape = 's32[1]{0}', space=sflag, size = 0x4, scoped, tag = 'scoped memory for mynet_fc_forward.1']
    #allocation5 [shape = 'u8[786432]{0}', space=vmem, size = 0xc0000, scoped, tag = 'input window, operand 1, single buffered']
    #allocation6 [shape = 's32[1]{0}', space=sflag, size = 0x4, scoped, tag = 'scoped memory for mynet_fc_forward.1']
    #allocation7 [shape = 'u8[32768]{0}', space=vmem, size = 0x8000, scoped, tag = 'input window, operand 5, single buffered']
    #allocation8 [shape = 'u8[32768]{0}', space=vmem, size = 0x8000, scoped, tag = 'input window, operand 9, single buffered']
    #allocation9 [shape = 's32[1]{0}', space=sflag, size = 0x4, scoped, tag = 'scoped memory for mynet_fc_forward.1']
    #allocation10 [shape = 'u8[4096]{0}', space=vmem, size = 0x1000, scoped, tag = 'output window, operand 0, single buffered']
    %18 = vsyncpa [#allocation3], 0
    %19 = vsyncpa [#allocation6], 0
    %20 = vsyncpa [#allocation9], 0
    %21 = vsyncpa [#allocation4], 0
    // Predicated region
    $region2: #{mynet_fc_forward.1} parent=1 // pred_check
      _
    $region3: #{mynet_fc_forward.1} parent=1 // pred_check_branch
      %23 = sbr.rel (0) target = $region5
    $region4: #{mynet_fc_forward.1} parent=1 // pred_region
      %s25 = ssub.s32 3072, 3072
      %26 = vsyncadd [#allocation3], %s25
      %s28 = sshll.u32 [#allocation2], 4
      %s29 = int_to_ptr.vmem [resolvable:$true] %s28
      %31 = dma.hbm_to_vmem [thread:$0]  %s0, 3072, %s29, [#allocation3]
    $region5: #{mynet_fc_forward.1} parent=1 // pred_fallthru
      _
    // Predicated region
    $region6: #{mynet_fc_forward.1} parent=1 // pred_check
      _
    $region7: #{mynet_fc_forward.1} parent=1 // pred_check_branch
      %33 = sbr.rel (0) target = $region9
    $region8: #{mynet_fc_forward.1} parent=1 // pred_region
      %s35 = ssub.s32 24576, 24576
      %36 = vsyncadd [#allocation6], %s35
      %s37 = sshll.u32 [#allocation5], 4
      %s38 = int_to_ptr.vmem [resolvable:$true] %s37
      %43 = dma.hbm_to_vmem [thread:$0]  %s1, 24576, %s38, [#allocation6], 64, 64, 4
    $region9: #{mynet_fc_forward.1} parent=1 // pred_fallthru
      _
    // Predicated region
    $region10: #{mynet_fc_forward.1} parent=1 // pred_check
      _
    $region11: #{mynet_fc_forward.1} parent=1 // pred_check_branch
      %45 = sbr.rel (0) target = $region13
    $region12: #{mynet_fc_forward.1} parent=1 // pred_region
      _
    $region13: #{mynet_fc_forward.1} parent=1 // pred_fallthru
      _
    // Predicated region
    $region14: #{mynet_fc_forward.1} parent=1 // pred_check
      _
    $region15: #{mynet_fc_forward.1} parent=1 // pred_check_branch
      %47 = sbr.rel (0) target = $region17
    $region16: #{mynet_fc_forward.1} parent=1 // pred_region
      _
    $region17: #{mynet_fc_forward.1} parent=1 // pred_fallthru
      _
    // Predicated region
    $region18: #{mynet_fc_forward.1} parent=1 // pred_check
      _
    $region19: #{mynet_fc_forward.1} parent=1 // pred_check_branch
      %49 = sbr.rel (0) target = $region21
    $region20: #{mynet_fc_forward.1} parent=1 // pred_region
      _
    $region21: #{mynet_fc_forward.1} parent=1 // pred_fallthru
      _
    // Predicated region
    $region22: #{mynet_fc_forward.1} parent=1 // pred_check
      _
    $region23: #{mynet_fc_forward.1} parent=1 // pred_check_branch
      %51 = sbr.rel (0) target = $region25
    $region24: #{mynet_fc_forward.1} parent=1 // pred_region
      %s53 = ssub.s32 1024, 1024
      %54 = vsyncadd [#allocation6], %s53
      %s55 = sshll.u32 [#allocation7], 4
      %s56 = int_to_ptr.vmem [resolvable:$true] %s55
      %61 = dma.hbm_to_vmem [thread:$0]  %s5, 1024, %s56, [#allocation6], 64, 64, 4
    $region25: #{mynet_fc_forward.1} parent=1 // pred_fallthru
      _
    // Predicated region
    $region26: #{mynet_fc_forward.1} parent=1 // pred_check
      _
    $region27: #{mynet_fc_forward.1} parent=1 // pred_check_branch
      %63 = sbr.rel (0) target = $region29
    $region28: #{mynet_fc_forward.1} parent=1 // pred_region
      _
    $region29: #{mynet_fc_forward.1} parent=1 // pred_fallthru
      _
    // Predicated region
    $region30: #{mynet_fc_forward.1} parent=1 // pred_check
      _
    $region31: #{mynet_fc_forward.1} parent=1 // pred_check_branch
      %65 = sbr.rel (0) target = $region33
    $region32: #{mynet_fc_forward.1} parent=1 // pred_region
      _
    $region33: #{mynet_fc_forward.1} parent=1 // pred_fallthru
      _
    // Predicated region
    $region34: #{mynet_fc_forward.1} parent=1 // pred_check
      _
    $region35: #{mynet_fc_forward.1} parent=1 // pred_check_branch
      %67 = sbr.rel (0) target = $region37
    $region36: #{mynet_fc_forward.1} parent=1 // pred_region
      _
    $region37: #{mynet_fc_forward.1} parent=1 // pred_fallthru
      _
    // Predicated region
    $region38: #{mynet_fc_forward.1} parent=1 // pred_check
      _
    $region39: #{mynet_fc_forward.1} parent=1 // pred_check_branch
      %69 = sbr.rel (0) target = $region41
    $region40: #{mynet_fc_forward.1} parent=1 // pred_region
      %s71 = ssub.s32 1024, 1024
      %72 = vsyncadd [#allocation9], %s71
      %s73 = sshll.u32 [#allocation8], 4
      %s74 = int_to_ptr.vmem [resolvable:$true] %s73
      %79 = dma.hbm_to_vmem [thread:$0]  %s9, 1024, %s74, [#allocation9], 64, 64, 4
    $region41: #{mynet_fc_forward.1} parent=1 // pred_fallthru
      _
    // Predicated region
    $region42: #{mynet_fc_forward.1} parent=1 // pred_check
      _
    $region43: #{mynet_fc_forward.1} parent=1 // pred_check_branch
      %81 = sbr.rel (0) target = $region45
    $region44: #{mynet_fc_forward.1} parent=1 // pred_region
      _
    $region45: #{mynet_fc_forward.1} parent=1 // pred_fallthru
      _
    // Predicated region
    $region46: #{mynet_fc_forward.1} parent=1 // pred_check
      _
    $region47: #{mynet_fc_forward.1} parent=1 // pred_check_branch
      %83 = sbr.rel (0) target = $region49
    $region48: #{mynet_fc_forward.1} parent=1 // pred_region
      _
    $region49: #{mynet_fc_forward.1} parent=1 // pred_fallthru
      _
    // Predicated region
    $region50: #{mynet_fc_forward.1} parent=1 // pred_check
      _
    $region51: #{mynet_fc_forward.1} parent=1 // pred_check_branch
      %85 = sbr.rel (0) target = $region53
    $region52: #{mynet_fc_forward.1} parent=1 // pred_region
      _
    $region53: #{mynet_fc_forward.1} parent=1 // pred_fallthru
      _
    // Predicated region
    $region54: #{mynet_fc_forward.1} parent=1 // pred_check
      _
    $region55: #{mynet_fc_forward.1} parent=1 // pred_check_branch
      %87 = sbr.rel (0) target = $region57
    $region56: #{mynet_fc_forward.1} parent=1 // pred_region
      %88 = dma.done [#allocation3], 3072
    $region57: #{mynet_fc_forward.1} parent=1 // pred_fallthru
      _
    // Predicated region
    $region58: #{mynet_fc_forward.1} parent=1 // pred_check
      _
    $region59: #{mynet_fc_forward.1} parent=1 // pred_check_branch
      %90 = sbr.rel (0) target = $region61
    $region60: #{mynet_fc_forward.1} parent=1 // pred_region
      %91 = dma.done [#allocation6], 24576
    $region61: #{mynet_fc_forward.1} parent=1 // pred_fallthru
      _
    // Predicated region
    $region62: #{mynet_fc_forward.1} parent=1 // pred_check
      _
    $region63: #{mynet_fc_forward.1} parent=1 // pred_check_branch
      %93 = sbr.rel (0) target = $region65
    $region64: #{mynet_fc_forward.1} parent=1 // pred_region
      %94 = dma.done [#allocation6], 1024
    $region65: #{mynet_fc_forward.1} parent=1 // pred_fallthru
      _
    // Predicated region
    $region66: #{mynet_fc_forward.1} parent=1 // pred_check
      _
    $region67: #{mynet_fc_forward.1} parent=1 // pred_check_branch
      %96 = sbr.rel (0) target = $region69
    $region68: #{mynet_fc_forward.1} parent=1 // pred_region
      %97 = dma.done [#allocation9], 1024
    $region69: #{mynet_fc_forward.1} parent=1 // pred_fallthru
      _
    %v99 = vld [vmem:[#allocation2] sm:$0xff]
    %v100 = vld [vmem:[#allocation2 + $0x8] sm:$0xff]
    %v101 = vld [vmem:[#allocation2 + $0x10] sm:$0xff]
    %v102 = vld [vmem:[#allocation2 + $0x18] sm:$0xff]
    %v103 = vld [vmem:[#allocation2 + $0x20] sm:$0xff]
    %v104 = vld [vmem:[#allocation2 + $0x28] sm:$0xff]
    %v105 = vld [vmem:[#allocation2 + $0x30] sm:$0xff]
    %v106 = vld [vmem:[#allocation2 + $0x38] sm:$0xff]
    %v107 = vld [vmem:[#allocation2 + $0x40] sm:$0xff]
    %v108 = vld [vmem:[#allocation2 + $0x48] sm:$0xff]
    %v109 = vld [vmem:[#allocation2 + $0x50] sm:$0xff]
    %v110 = vld [vmem:[#allocation2 + $0x58] sm:$0xff]
    %v111 = vld [vmem:[#allocation2 + $0x60] sm:$0xff]
    %v112 = vld [vmem:[#allocation2 + $0x68] sm:$0xff]
    %v113 = vld [vmem:[#allocation2 + $0x70] sm:$0xff]
    %v114 = vld [vmem:[#allocation2 + $0x78] sm:$0xff]
    %v115 = vld [vmem:[#allocation2 + $0x80] sm:$0xff]
    %v116 = vld [vmem:[#allocation2 + $0x88] sm:$0xff]
    %v117 = vld [vmem:[#allocation2 + $0x90] sm:$0xff]
    %v118 = vld [vmem:[#allocation2 + $0x98] sm:$0xff]
    %v119 = vld [vmem:[#allocation2 + $0xa0] sm:$0xff]
    %v120 = vld [vmem:[#allocation2 + $0xa8] sm:$0xff]
    %v121 = vld [vmem:[#allocation2 + $0xb0] sm:$0xff]
    %v122 = vld [vmem:[#allocation2 + $0xb8] sm:$0xff]
    %v123 = vpack.c.bf16 %v99, %v99
    %v124 = vpack.c.bf16 %v100, %v100
    %v125 = vpack.c.bf16 %v101, %v101
    %v126 = vpack.c.bf16 %v102, %v102
    %v127 = vpack.c.bf16 %v103, %v103
    %v128 = vpack.c.bf16 %v104, %v104
    %v129 = vpack.c.bf16 %v105, %v105
    %v130 = vpack.c.bf16 %v106, %v106
    %v131 = vpack.c.bf16 %v107, %v107
    %v132 = vpack.c.bf16 %v108, %v108
    %v133 = vpack.c.bf16 %v109, %v109
    %v134 = vpack.c.bf16 %v110, %v110
    %v135 = vpack.c.bf16 %v111, %v111
    %v136 = vpack.c.bf16 %v112, %v112
    %v137 = vpack.c.bf16 %v113, %v113
    %v138 = vpack.c.bf16 %v114, %v114
    %v139 = vpack.c.bf16 %v115, %v115
    %v140 = vpack.c.bf16 %v116, %v116
    %v141 = vpack.c.bf16 %v117, %v117
    %v142 = vpack.c.bf16 %v118, %v118
    %v143 = vpack.c.bf16 %v119, %v119
    %v144 = vpack.c.bf16 %v120, %v120
    %v145 = vpack.c.bf16 %v121, %v121
    %v146 = vpack.c.bf16 %v122, %v122
    %v147 = vld [vmem:[#allocation5] sm:$0xf]
    %v148 = vld [vmem:[#allocation5 + $0x4] sm:$0xf]
    %v149 = vld [vmem:[#allocation5 + $0x8] sm:$0xf]
    %v150 = vld [vmem:[#allocation5 + $0xc] sm:$0xf]
    %v151 = vld [vmem:[#allocation5 + $0x10] sm:$0xf]
    %v152 = vld [vmem:[#allocation5 + $0x14] sm:$0xf]
    %v153 = vld [vmem:[#allocation5 + $0x18] sm:$0xf]
    %v154 = vld [vmem:[#allocation5 + $0x1c] sm:$0xf]
    %v155 = vld [vmem:[#allocation5 + $0x20] sm:$0xf]
    %v156 = vld [vmem:[#allocation5 + $0x24] sm:$0xf]
    %v157 = vld [vmem:[#allocation5 + $0x28] sm:$0xf]
    %v158 = vld [vmem:[#allocation5 + $0x2c] sm:$0xf]
    %v159 = vld [vmem:[#allocation5 + $0x30] sm:$0xf]
    %v160 = vld [vmem:[#allocation5 + $0x34] sm:$0xf]
    %v161 = vld [vmem:[#allocation5 + $0x38] sm:$0xf]
    %v162 = vld [vmem:[#allocation5 + $0x3c] sm:$0xf]
    %v163 = vld [vmem:[#allocation5 + $0x40] sm:$0xf]
    %v164 = vld [vmem:[#allocation5 + $0x44] sm:$0xf]
    %v165 = vld [vmem:[#allocation5 + $0x48] sm:$0xf]
    %v166 = vld [vmem:[#allocation5 + $0x4c] sm:$0xf]
    %v167 = vld [vmem:[#allocation5 + $0x50] sm:$0xf]
    %v168 = vld [vmem:[#allocation5 + $0x54] sm:$0xf]
    %v169 = vld [vmem:[#allocation5 + $0x58] sm:$0xf]
    %v170 = vld [vmem:[#allocation5 + $0x5c] sm:$0xf]
    %v171 = vld [vmem:[#allocation5 + $0x60] sm:$0xf]
    %v172 = vld [vmem:[#allocation5 + $0x64] sm:$0xf]
    %v173 = vld [vmem:[#allocation5 + $0x68] sm:$0xf]
    %v174 = vld [vmem:[#allocation5 + $0x6c] sm:$0xf]
    %v175 = vld [vmem:[#allocation5 + $0x70] sm:$0xf]
    %v176 = vld [vmem:[#allocation5 + $0x74] sm:$0xf]
    %v177 = vld [vmem:[#allocation5 + $0x78] sm:$0xf]
    %v178 = vld [vmem:[#allocation5 + $0x7c] sm:$0xf]
    %v179 = vld [vmem:[#allocation5 + $0x80] sm:$0xf]
    %v180 = vld [vmem:[#allocation5 + $0x84] sm:$0xf]
    %v181 = vld [vmem:[#allocation5 + $0x88] sm:$0xf]
    %v182 = vld [vmem:[#allocation5 + $0x8c] sm:$0xf]
    %v183 = vld [vmem:[#allocation5 + $0x90] sm:$0xf]
    %v184 = vld [vmem:[#allocation5 + $0x94] sm:$0xf]
    %v185 = vld [vmem:[#allocation5 + $0x98] sm:$0xf]
    %v186 = vld [vmem:[#allocation5 + $0x9c] sm:$0xf]
    %v187 = vld [vmem:[#allocation5 + $0xa0] sm:$0xf]
    %v188 = vld [vmem:[#allocation5 + $0xa4] sm:$0xf]
    %v189 = vld [vmem:[#allocation5 + $0xa8] sm:$0xf]
    %v190 = vld [vmem:[#allocation5 + $0xac] sm:$0xf]
    %v191 = vld [vmem:[#allocation5 + $0xb0] sm:$0xf]
    %v192 = vld [vmem:[#allocation5 + $0xb4] sm:$0xf]
    %v193 = vld [vmem:[#allocation5 + $0xb8] sm:$0xf]
    %v194 = vld [vmem:[#allocation5 + $0xbc] sm:$0xf]
    %v195 = vld [vmem:[#allocation5 + $0xc0] sm:$0xf]
    %v196 = vld [vmem:[#allocation5 + $0xc4] sm:$0xf]
    %v197 = vld [vmem:[#allocation5 + $0xc8] sm:$0xf]
    %v198 = vld [vmem:[#allocation5 + $0xcc] sm:$0xf]
    %v199 = vld [vmem:[#allocation5 + $0xd0] sm:$0xf]
    %v200 = vld [vmem:[#allocation5 + $0xd4] sm:$0xf]
    %v201 = vld [vmem:[#allocation5 + $0xd8] sm:$0xf]
    %v202 = vld [vmem:[#allocation5 + $0xdc] sm:$0xf]
    %v203 = vld [vmem:[#allocation5 + $0xe0] sm:$0xf]
    %v204 = vld [vmem:[#allocation5 + $0xe4] sm:$0xf]
    %v205 = vld [vmem:[#allocation5 + $0xe8] sm:$0xf]
    %v206 = vld [vmem:[#allocation5 + $0xec] sm:$0xf]
    %v207 = vld [vmem:[#allocation5 + $0xf0] sm:$0xf]
    %v208 = vld [vmem:[#allocation5 + $0xf4] sm:$0xf]
    %v209 = vld [vmem:[#allocation5 + $0xf8] sm:$0xf]
    %v210 = vld [vmem:[#allocation5 + $0xfc] sm:$0xf]
    %v211 = vld [vmem:[#allocation5 + $0x100] sm:$0xf]
    %v212 = vld [vmem:[#allocation5 + $0x104] sm:$0xf]
    %v213 = vld [vmem:[#allocation5 + $0x108] sm:$0xf]
    %v214 = vld [vmem:[#allocation5 + $0x10c] sm:$0xf]
    %v215 = vld [vmem:[#allocation5 + $0x110] sm:$0xf]
    %v216 = vld [vmem:[#allocation5 + $0x114] sm:$0xf]
    %v217 = vld [vmem:[#allocation5 + $0x118] sm:$0xf]
    %v218 = vld [vmem:[#allocation5 + $0x11c] sm:$0xf]
    %v219 = vld [vmem:[#allocation5 + $0x120] sm:$0xf]
    %v220 = vld [vmem:[#allocation5 + $0x124] sm:$0xf]
    %v221 = vld [vmem:[#allocation5 + $0x128] sm:$0xf]
    %v222 = vld [vmem:[#allocation5 + $0x12c] sm:$0xf]
    %v223 = vld [vmem:[#allocation5 + $0x130] sm:$0xf]
    %v224 = vld [vmem:[#allocation5 + $0x134] sm:$0xf]
    %v225 = vld [vmem:[#allocation5 + $0x138] sm:$0xf]
    %v226 = vld [vmem:[#allocation5 + $0x13c] sm:$0xf]
    %v227 = vld [vmem:[#allocation5 + $0x140] sm:$0xf]
    %v228 = vld [vmem:[#allocation5 + $0x144] sm:$0xf]
    %v229 = vld [vmem:[#allocation5 + $0x148] sm:$0xf]
    %v230 = vld [vmem:[#allocation5 + $0x14c] sm:$0xf]
    %v231 = vld [vmem:[#allocation5 + $0x150] sm:$0xf]
    %v232 = vld [vmem:[#allocation5 + $0x154] sm:$0xf]
    %v233 = vld [vmem:[#allocation5 + $0x158] sm:$0xf]
    %v234 = vld [vmem:[#allocation5 + $0x15c] sm:$0xf]
    %v235 = vld [vmem:[#allocation5 + $0x160] sm:$0xf]
    %v236 = vld [vmem:[#allocation5 + $0x164] sm:$0xf]
    %v237 = vld [vmem:[#allocation5 + $0x168] sm:$0xf]
    %v238 = vld [vmem:[#allocation5 + $0x16c] sm:$0xf]
    %v239 = vld [vmem:[#allocation5 + $0x170] sm:$0xf]
    %v240 = vld [vmem:[#allocation5 + $0x174] sm:$0xf]
    %v241 = vld [vmem:[#allocation5 + $0x178] sm:$0xf]
    %v242 = vld [vmem:[#allocation5 + $0x17c] sm:$0xf]
    %v243 = vld [vmem:[#allocation5 + $0x180] sm:$0xf]
    %v244 = vld [vmem:[#allocation5 + $0x184] sm:$0xf]
    %v245 = vld [vmem:[#allocation5 + $0x188] sm:$0xf]
    %v246 = vld [vmem:[#allocation5 + $0x18c] sm:$0xf]
    %v247 = vld [vmem:[#allocation5 + $0x190] sm:$0xf]
    %v248 = vld [vmem:[#allocation5 + $0x194] sm:$0xf]
    %v249 = vld [vmem:[#allocation5 + $0x198] sm:$0xf]
    %v250 = vld [vmem:[#allocation5 + $0x19c] sm:$0xf]
    %v251 = vld [vmem:[#allocation5 + $0x1a0] sm:$0xf]
    %v252 = vld [vmem:[#allocation5 + $0x1a4] sm:$0xf]
    %v253 = vld [vmem:[#allocation5 + $0x1a8] sm:$0xf]
    %v254 = vld [vmem:[#allocation5 + $0x1ac] sm:$0xf]
    %v255 = vld [vmem:[#allocation5 + $0x1b0] sm:$0xf]
    %v256 = vld [vmem:[#allocation5 + $0x1b4] sm:$0xf]
    %v257 = vld [vmem:[#allocation5 + $0x1b8] sm:$0xf]
    %v258 = vld [vmem:[#allocation5 + $0x1bc] sm:$0xf]
    %v259 = vld [vmem:[#allocation5 + $0x1c0] sm:$0xf]
    %v260 = vld [vmem:[#allocation5 + $0x1c4] sm:$0xf]
    %v261 = vld [vmem:[#allocation5 + $0x1c8] sm:$0xf]
    %v262 = vld [vmem:[#allocation5 + $0x1cc] sm:$0xf]
    %v263 = vld [vmem:[#allocation5 + $0x1d0] sm:$0xf]
    %v264 = vld [vmem:[#allocation5 + $0x1d4] sm:$0xf]
    %v265 = vld [vmem:[#allocation5 + $0x1d8] sm:$0xf]
    %v266 = vld [vmem:[#allocation5 + $0x1dc] sm:$0xf]
    %v267 = vld [vmem:[#allocation5 + $0x1e0] sm:$0xf]
    %v268 = vld [vmem:[#allocation5 + $0x1e4] sm:$0xf]
    %v269 = vld [vmem:[#allocation5 + $0x1e8] sm:$0xf]
    %v270 = vld [vmem:[#allocation5 + $0x1ec] sm:$0xf]
    %v271 = vld [vmem:[#allocation5 + $0x1f0] sm:$0xf]
    %v272 = vld [vmem:[#allocation5 + $0x1f4] sm:$0xf]
    %v273 = vld [vmem:[#allocation5 + $0x1f8] sm:$0xf]
    %v274 = vld [vmem:[#allocation5 + $0x1fc] sm:$0xf]
    %v275 = vld [vmem:[#allocation5 + $0x200] sm:$0xf]
    %v276 = vld [vmem:[#allocation5 + $0x204] sm:$0xf]
    %v277 = vld [vmem:[#allocation5 + $0x208] sm:$0xf]
    %v278 = vld [vmem:[#allocation5 + $0x20c] sm:$0xf]
    %v279 = vld [vmem:[#allocation5 + $0x210] sm:$0xf]
    %v280 = vld [vmem:[#allocation5 + $0x214] sm:$0xf]
    %v281 = vld [vmem:[#allocation5 + $0x218] sm:$0xf]
    %v282 = vld [vmem:[#allocation5 + $0x21c] sm:$0xf]
    %v283 = vld [vmem:[#allocation5 + $0x220] sm:$0xf]
    %v284 = vld [vmem:[#allocation5 + $0x224] sm:$0xf]
    %v285 = vld [vmem:[#allocation5 + $0x228] sm:$0xf]
    %v286 = vld [vmem:[#allocation5 + $0x22c] sm:$0xf]
    %v287 = vld [vmem:[#allocation5 + $0x230] sm:$0xf]
    %v288 = vld [vmem:[#allocation5 + $0x234] sm:$0xf]
    %v289 = vld [vmem:[#allocation5 + $0x238] sm:$0xf]
    %v290 = vld [vmem:[#allocation5 + $0x23c] sm:$0xf]
    %v291 = vld [vmem:[#allocation5 + $0x240] sm:$0xf]
    %v292 = vld [vmem:[#allocation5 + $0x244] sm:$0xf]
    %v293 = vld [vmem:[#allocation5 + $0x248] sm:$0xf]
    %v294 = vld [vmem:[#allocation5 + $0x24c] sm:$0xf]
    %v295 = vld [vmem:[#allocation5 + $0x250] sm:$0xf]
    %v296 = vld [vmem:[#allocation5 + $0x254] sm:$0xf]
    %v297 = vld [vmem:[#allocation5 + $0x258] sm:$0xf]
    %v298 = vld [vmem:[#allocation5 + $0x25c] sm:$0xf]
    %v299 = vld [vmem:[#allocation5 + $0x260] sm:$0xf]
    %v300 = vld [vmem:[#allocation5 + $0x264] sm:$0xf]
    %v301 = vld [vmem:[#allocation5 + $0x268] sm:$0xf]
    %v302 = vld [vmem:[#allocation5 + $0x26c] sm:$0xf]
    %v303 = vld [vmem:[#allocation5 + $0x270] sm:$0xf]
    %v304 = vld [vmem:[#allocation5 + $0x274] sm:$0xf]
    %v305 = vld [vmem:[#allocation5 + $0x278] sm:$0xf]
    %v306 = vld [vmem:[#allocation5 + $0x27c] sm:$0xf]
    %v307 = vld [vmem:[#allocation5 + $0x280] sm:$0xf]
    %v308 = vld [vmem:[#allocation5 + $0x284] sm:$0xf]
    %v309 = vld [vmem:[#allocation5 + $0x288] sm:$0xf]
    %v310 = vld [vmem:[#allocation5 + $0x28c] sm:$0xf]
    %v311 = vld [vmem:[#allocation5 + $0x290] sm:$0xf]
    %v312 = vld [vmem:[#allocation5 + $0x294] sm:$0xf]
    %v313 = vld [vmem:[#allocation5 + $0x298] sm:$0xf]
    %v314 = vld [vmem:[#allocation5 + $0x29c] sm:$0xf]
    %v315 = vld [vmem:[#allocation5 + $0x2a0] sm:$0xf]
    %v316 = vld [vmem:[#allocation5 + $0x2a4] sm:$0xf]
    %v317 = vld [vmem:[#allocation5 + $0x2a8] sm:$0xf]
    %v318 = vld [vmem:[#allocation5 + $0x2ac] sm:$0xf]
    %v319 = vld [vmem:[#allocation5 + $0x2b0] sm:$0xf]
    %v320 = vld [vmem:[#allocation5 + $0x2b4] sm:$0xf]
    %v321 = vld [vmem:[#allocation5 + $0x2b8] sm:$0xf]
    %v322 = vld [vmem:[#allocation5 + $0x2bc] sm:$0xf]
    %v323 = vld [vmem:[#allocation5 + $0x2c0] sm:$0xf]
    %v324 = vld [vmem:[#allocation5 + $0x2c4] sm:$0xf]
    %v325 = vld [vmem:[#allocation5 + $0x2c8] sm:$0xf]
    %v326 = vld [vmem:[#allocation5 + $0x2cc] sm:$0xf]
    %v327 = vld [vmem:[#allocation5 + $0x2d0] sm:$0xf]
    %v328 = vld [vmem:[#allocation5 + $0x2d4] sm:$0xf]
    %v329 = vld [vmem:[#allocation5 + $0x2d8] sm:$0xf]
    %v330 = vld [vmem:[#allocation5 + $0x2dc] sm:$0xf]
    %v331 = vld [vmem:[#allocation5 + $0x2e0] sm:$0xf]
    %v332 = vld [vmem:[#allocation5 + $0x2e4] sm:$0xf]
    %v333 = vld [vmem:[#allocation5 + $0x2e8] sm:$0xf]
    %v334 = vld [vmem:[#allocation5 + $0x2ec] sm:$0xf]
    %v335 = vld [vmem:[#allocation5 + $0x2f0] sm:$0xf]
    %v336 = vld [vmem:[#allocation5 + $0x2f4] sm:$0xf]
    %v337 = vld [vmem:[#allocation5 + $0x2f8] sm:$0xf]
    %v338 = vld [vmem:[#allocation5 + $0x2fc] sm:$0xf]
    %v339 = vld [vmem:[#allocation5 + $0x300] sm:$0xf]
    %v340 = vld [vmem:[#allocation5 + $0x304] sm:$0xf]
    %v341 = vld [vmem:[#allocation5 + $0x308] sm:$0xf]
    %v342 = vld [vmem:[#allocation5 + $0x30c] sm:$0xf]
    %v343 = vld [vmem:[#allocation5 + $0x310] sm:$0xf]
    %v344 = vld [vmem:[#allocation5 + $0x314] sm:$0xf]
    %v345 = vld [vmem:[#allocation5 + $0x318] sm:$0xf]
    %v346 = vld [vmem:[#allocation5 + $0x31c] sm:$0xf]
    %v347 = vld [vmem:[#allocation5 + $0x320] sm:$0xf]
    %v348 = vld [vmem:[#allocation5 + $0x324] sm:$0xf]
    %v349 = vld [vmem:[#allocation5 + $0x328] sm:$0xf]
    %v350 = vld [vmem:[#allocation5 + $0x32c] sm:$0xf]
    %v351 = vld [vmem:[#allocation5 + $0x330] sm:$0xf]
    %v352 = vld [vmem:[#allocation5 + $0x334] sm:$0xf]
    %v353 = vld [vmem:[#allocation5 + $0x338] sm:$0xf]
    %v354 = vld [vmem:[#allocation5 + $0x33c] sm:$0xf]
    %v355 = vld [vmem:[#allocation5 + $0x340] sm:$0xf]
    %v356 = vld [vmem:[#allocation5 + $0x344] sm:$0xf]
    %v357 = vld [vmem:[#allocation5 + $0x348] sm:$0xf]
    %v358 = vld [vmem:[#allocation5 + $0x34c] sm:$0xf]
    %v359 = vld [vmem:[#allocation5 + $0x350] sm:$0xf]
    %v360 = vld [vmem:[#allocation5 + $0x354] sm:$0xf]
    %v361 = vld [vmem:[#allocation5 + $0x358] sm:$0xf]
    %v362 = vld [vmem:[#allocation5 + $0x35c] sm:$0xf]
    %v363 = vld [vmem:[#allocation5 + $0x360] sm:$0xf]
    %v364 = vld [vmem:[#allocation5 + $0x364] sm:$0xf]
    %v365 = vld [vmem:[#allocation5 + $0x368] sm:$0xf]
    %v366 = vld [vmem:[#allocation5 + $0x36c] sm:$0xf]
    %v367 = vld [vmem:[#allocation5 + $0x370] sm:$0xf]
    %v368 = vld [vmem:[#allocation5 + $0x374] sm:$0xf]
    %v369 = vld [vmem:[#allocation5 + $0x378] sm:$0xf]
    %v370 = vld [vmem:[#allocation5 + $0x37c] sm:$0xf]
    %v371 = vld [vmem:[#allocation5 + $0x380] sm:$0xf]
    %v372 = vld [vmem:[#allocation5 + $0x384] sm:$0xf]
    %v373 = vld [vmem:[#allocation5 + $0x388] sm:$0xf]
    %v374 = vld [vmem:[#allocation5 + $0x38c] sm:$0xf]
    %v375 = vld [vmem:[#allocation5 + $0x390] sm:$0xf]
    %v376 = vld [vmem:[#allocation5 + $0x394] sm:$0xf]
    %v377 = vld [vmem:[#allocation5 + $0x398] sm:$0xf]
    %v378 = vld [vmem:[#allocation5 + $0x39c] sm:$0xf]
    %v379 = vld [vmem:[#allocation5 + $0x3a0] sm:$0xf]
    %v380 = vld [vmem:[#allocation5 + $0x3a4] sm:$0xf]
    %v381 = vld [vmem:[#allocation5 + $0x3a8] sm:$0xf]
    %v382 = vld [vmem:[#allocation5 + $0x3ac] sm:$0xf]
    %v383 = vld [vmem:[#allocation5 + $0x3b0] sm:$0xf]
    %v384 = vld [vmem:[#allocation5 + $0x3b4] sm:$0xf]
    %v385 = vld [vmem:[#allocation5 + $0x3b8] sm:$0xf]
    %v386 = vld [vmem:[#allocation5 + $0x3bc] sm:$0xf]
    %v387 = vld [vmem:[#allocation5 + $0x3c0] sm:$0xf]
    %v388 = vld [vmem:[#allocation5 + $0x3c4] sm:$0xf]
    %v389 = vld [vmem:[#allocation5 + $0x3c8] sm:$0xf]
    %v390 = vld [vmem:[#allocation5 + $0x3cc] sm:$0xf]
    %v391 = vld [vmem:[#allocation5 + $0x3d0] sm:$0xf]
    %v392 = vld [vmem:[#allocation5 + $0x3d4] sm:$0xf]
    %v393 = vld [vmem:[#allocation5 + $0x3d8] sm:$0xf]
    %v394 = vld [vmem:[#allocation5 + $0x3dc] sm:$0xf]
    %v395 = vld [vmem:[#allocation5 + $0x3e0] sm:$0xf]
    %v396 = vld [vmem:[#allocation5 + $0x3e4] sm:$0xf]
    %v397 = vld [vmem:[#allocation5 + $0x3e8] sm:$0xf]
    %v398 = vld [vmem:[#allocation5 + $0x3ec] sm:$0xf]
    %v399 = vld [vmem:[#allocation5 + $0x3f0] sm:$0xf]
    %v400 = vld [vmem:[#allocation5 + $0x3f4] sm:$0xf]
    %v401 = vld [vmem:[#allocation5 + $0x3f8] sm:$0xf]
    %v402 = vld [vmem:[#allocation5 + $0x3fc] sm:$0xf]
    %v403 = vld [vmem:[#allocation5 + $0x400] sm:$0xf]
    %v404 = vld [vmem:[#allocation5 + $0x404] sm:$0xf]
    %v405 = vld [vmem:[#allocation5 + $0x408] sm:$0xf]
    %v406 = vld [vmem:[#allocation5 + $0x40c] sm:$0xf]
    %v407 = vld [vmem:[#allocation5 + $0x410] sm:$0xf]
    %v408 = vld [vmem:[#allocation5 + $0x414] sm:$0xf]
    %v409 = vld [vmem:[#allocation5 + $0x418] sm:$0xf]
    %v410 = vld [vmem:[#allocation5 + $0x41c] sm:$0xf]
    %v411 = vld [vmem:[#allocation5 + $0x420] sm:$0xf]
    %v412 = vld [vmem:[#allocation5 + $0x424] sm:$0xf]
    %v413 = vld [vmem:[#allocation5 + $0x428] sm:$0xf]
    %v414 = vld [vmem:[#allocation5 + $0x42c] sm:$0xf]
    %v415 = vld [vmem:[#allocation5 + $0x430] sm:$0xf]
    %v416 = vld [vmem:[#allocation5 + $0x434] sm:$0xf]
    %v417 = vld [vmem:[#allocation5 + $0x438] sm:$0xf]
    %v418 = vld [vmem:[#allocation5 + $0x43c] sm:$0xf]
    %v419 = vld [vmem:[#allocation5 + $0x440] sm:$0xf]
    %v420 = vld [vmem:[#allocation5 + $0x444] sm:$0xf]
    %v421 = vld [vmem:[#allocation5 + $0x448] sm:$0xf]
    %v422 = vld [vmem:[#allocation5 + $0x44c] sm:$0xf]
    %v423 = vld [vmem:[#allocation5 + $0x450] sm:$0xf]
    %v424 = vld [vmem:[#allocation5 + $0x454] sm:$0xf]
    %v425 = vld [vmem:[#allocation5 + $0x458] sm:$0xf]
    %v426 = vld [vmem:[#allocation5 + $0x45c] sm:$0xf]
    %v427 = vld [vmem:[#allocation5 + $0x460] sm:$0xf]
    %v428 = vld [vmem:[#allocation5 + $0x464] sm:$0xf]
    %v429 = vld [vmem:[#allocation5 + $0x468] sm:$0xf]
    %v430 = vld [vmem:[#allocation5 + $0x46c] sm:$0xf]
    %v431 = vld [vmem:[#allocation5 + $0x470] sm:$0xf]
    %v432 = vld [vmem:[#allocation5 + $0x474] sm:$0xf]
    %v433 = vld [vmem:[#allocation5 + $0x478] sm:$0xf]
    %v434 = vld [vmem:[#allocation5 + $0x47c] sm:$0xf]
    %v435 = vld [vmem:[#allocation5 + $0x480] sm:$0xf]
    %v436 = vld [vmem:[#allocation5 + $0x484] sm:$0xf]
    %v437 = vld [vmem:[#allocation5 + $0x488] sm:$0xf]
    %v438 = vld [vmem:[#allocation5 + $0x48c] sm:$0xf]
    %v439 = vld [vmem:[#allocation5 + $0x490] sm:$0xf]
    %v440 = vld [vmem:[#allocation5 + $0x494] sm:$0xf]
    %v441 = vld [vmem:[#allocation5 + $0x498] sm:$0xf]
    %v442 = vld [vmem:[#allocation5 + $0x49c] sm:$0xf]
    %v443 = vld [vmem:[#allocation5 + $0x4a0] sm:$0xf]
    %v444 = vld [vmem:[#allocation5 + $0x4a4] sm:$0xf]
    %v445 = vld [vmem:[#allocation5 + $0x4a8] sm:$0xf]
    %v446 = vld [vmem:[#allocation5 + $0x4ac] sm:$0xf]
    %v447 = vld [vmem:[#allocation5 + $0x4b0] sm:$0xf]
    %v448 = vld [vmem:[#allocation5 + $0x4b4] sm:$0xf]
    %v449 = vld [vmem:[#allocation5 + $0x4b8] sm:$0xf]
    %v450 = vld [vmem:[#allocation5 + $0x4bc] sm:$0xf]
    %v451 = vld [vmem:[#allocation5 + $0x4c0] sm:$0xf]
    %v452 = vld [vmem:[#allocation5 + $0x4c4] sm:$0xf]
    %v453 = vld [vmem:[#allocation5 + $0x4c8] sm:$0xf]
    %v454 = vld [vmem:[#allocation5 + $0x4cc] sm:$0xf]
    %v455 = vld [vmem:[#allocation5 + $0x4d0] sm:$0xf]
    %v456 = vld [vmem:[#allocation5 + $0x4d4] sm:$0xf]
    %v457 = vld [vmem:[#allocation5 + $0x4d8] sm:$0xf]
    %v458 = vld [vmem:[#allocation5 + $0x4dc] sm:$0xf]
    %v459 = vld [vmem:[#allocation5 + $0x4e0] sm:$0xf]
    %v460 = vld [vmem:[#allocation5 + $0x4e4] sm:$0xf]
    %v461 = vld [vmem:[#allocation5 + $0x4e8] sm:$0xf]
    %v462 = vld [vmem:[#allocation5 + $0x4ec] sm:$0xf]
    %v463 = vld [vmem:[#allocation5 + $0x4f0] sm:$0xf]
    %v464 = vld [vmem:[#allocation5 + $0x4f4] sm:$0xf]
    %v465 = vld [vmem:[#allocation5 + $0x4f8] sm:$0xf]
    %v466 = vld [vmem:[#allocation5 + $0x4fc] sm:$0xf]
    %v467 = vld [vmem:[#allocation5 + $0x500] sm:$0xf]
    %v468 = vld [vmem:[#allocation5 + $0x504] sm:$0xf]
    %v469 = vld [vmem:[#allocation5 + $0x508] sm:$0xf]
    %v470 = vld [vmem:[#allocation5 + $0x50c] sm:$0xf]
    %v471 = vld [vmem:[#allocation5 + $0x510] sm:$0xf]
    %v472 = vld [vmem:[#allocation5 + $0x514] sm:$0xf]
    %v473 = vld [vmem:[#allocation5 + $0x518] sm:$0xf]
    %v474 = vld [vmem:[#allocation5 + $0x51c] sm:$0xf]
    %v475 = vld [vmem:[#allocation5 + $0x520] sm:$0xf]
    %v476 = vld [vmem:[#allocation5 + $0x524] sm:$0xf]
    %v477 = vld [vmem:[#allocation5 + $0x528] sm:$0xf]
    %v478 = vld [vmem:[#allocation5 + $0x52c] sm:$0xf]
    %v479 = vld [vmem:[#allocation5 + $0x530] sm:$0xf]
    %v480 = vld [vmem:[#allocation5 + $0x534] sm:$0xf]
    %v481 = vld [vmem:[#allocation5 + $0x538] sm:$0xf]
    %v482 = vld [vmem:[#allocation5 + $0x53c] sm:$0xf]
    %v483 = vld [vmem:[#allocation5 + $0x540] sm:$0xf]
    %v484 = vld [vmem:[#allocation5 + $0x544] sm:$0xf]
    %v485 = vld [vmem:[#allocation5 + $0x548] sm:$0xf]
    %v486 = vld [vmem:[#allocation5 + $0x54c] sm:$0xf]
    %v487 = vld [vmem:[#allocation5 + $0x550] sm:$0xf]
    %v488 = vld [vmem:[#allocation5 + $0x554] sm:$0xf]
    %v489 = vld [vmem:[#allocation5 + $0x558] sm:$0xf]
    %v490 = vld [vmem:[#allocation5 + $0x55c] sm:$0xf]
    %v491 = vld [vmem:[#allocation5 + $0x560] sm:$0xf]
    %v492 = vld [vmem:[#allocation5 + $0x564] sm:$0xf]
    %v493 = vld [vmem:[#allocation5 + $0x568] sm:$0xf]
    %v494 = vld [vmem:[#allocation5 + $0x56c] sm:$0xf]
    %v495 = vld [vmem:[#allocation5 + $0x570] sm:$0xf]
    %v496 = vld [vmem:[#allocation5 + $0x574] sm:$0xf]
    %v497 = vld [vmem:[#allocation5 + $0x578] sm:$0xf]
    %v498 = vld [vmem:[#allocation5 + $0x57c] sm:$0xf]
    %v499 = vld [vmem:[#allocation5 + $0x580] sm:$0xf]
    %v500 = vld [vmem:[#allocation5 + $0x584] sm:$0xf]
    %v501 = vld [vmem:[#allocation5 + $0x588] sm:$0xf]
    %v502 = vld [vmem:[#allocation5 + $0x58c] sm:$0xf]
    %v503 = vld [vmem:[#allocation5 + $0x590] sm:$0xf]
    %v504 = vld [vmem:[#allocation5 + $0x594] sm:$0xf]
    %v505 = vld [vmem:[#allocation5 + $0x598] sm:$0xf]
    %v506 = vld [vmem:[#allocation5 + $0x59c] sm:$0xf]
    %v507 = vld [vmem:[#allocation5 + $0x5a0] sm:$0xf]
    %v508 = vld [vmem:[#allocation5 + $0x5a4] sm:$0xf]
    %v509 = vld [vmem:[#allocation5 + $0x5a8] sm:$0xf]
    %v510 = vld [vmem:[#allocation5 + $0x5ac] sm:$0xf]
    %v511 = vld [vmem:[#allocation5 + $0x5b0] sm:$0xf]
    %v512 = vld [vmem:[#allocation5 + $0x5b4] sm:$0xf]
    %v513 = vld [vmem:[#allocation5 + $0x5b8] sm:$0xf]
    %v514 = vld [vmem:[#allocation5 + $0x5bc] sm:$0xf]
    %v515 = vld [vmem:[#allocation5 + $0x5c0] sm:$0xf]
    %v516 = vld [vmem:[#allocation5 + $0x5c4] sm:$0xf]
    %v517 = vld [vmem:[#allocation5 + $0x5c8] sm:$0xf]
    %v518 = vld [vmem:[#allocation5 + $0x5cc] sm:$0xf]
    %v519 = vld [vmem:[#allocation5 + $0x5d0] sm:$0xf]
    %v520 = vld [vmem:[#allocation5 + $0x5d4] sm:$0xf]
    %v521 = vld [vmem:[#allocation5 + $0x5d8] sm:$0xf]
    %v522 = vld [vmem:[#allocation5 + $0x5dc] sm:$0xf]
    %v523 = vld [vmem:[#allocation5 + $0x5e0] sm:$0xf]
    %v524 = vld [vmem:[#allocation5 + $0x5e4] sm:$0xf]
    %v525 = vld [vmem:[#allocation5 + $0x5e8] sm:$0xf]
    %v526 = vld [vmem:[#allocation5 + $0x5ec] sm:$0xf]
    %v527 = vld [vmem:[#allocation5 + $0x5f0] sm:$0xf]
    %v528 = vld [vmem:[#allocation5 + $0x5f4] sm:$0xf]
    %v529 = vld [vmem:[#allocation5 + $0x5f8] sm:$0xf]
    %v530 = vld [vmem:[#allocation5 + $0x5fc] sm:$0xf]
    %v531 = vld [vmem:[%s2] sm:$0x1]
    %v533 = vlaneseq
    %v534 = vshrl.u32 %v533, 7
    %v535 = vsub.s32 0, %v534
    %v536 = vrot.slane %v531, %v535
    %v922 = vunpack.c.l.b16 %v147
    %v923 = vunpack.c.l.b16 %v148
    %v924 = vunpack.c.l.b16 %v149
    %v925 = vunpack.c.l.b16 %v150
    %v926 = vunpack.c.l.b16 %v151
    %v927 = vunpack.c.l.b16 %v152
    %v928 = vunpack.c.l.b16 %v153
    %v929 = vunpack.c.l.b16 %v154
    %v930 = vunpack.c.l.b16 %v155
    %v931 = vunpack.c.l.b16 %v156
    %v932 = vunpack.c.l.b16 %v157
    %v933 = vunpack.c.l.b16 %v158
    %v934 = vunpack.c.l.b16 %v159
    %v935 = vunpack.c.l.b16 %v160
    %v936 = vunpack.c.l.b16 %v161
    %v937 = vunpack.c.l.b16 %v162
    %v938 = vunpack.c.l.b16 %v163
    %v939 = vunpack.c.l.b16 %v164
    %v940 = vunpack.c.l.b16 %v165
    %v941 = vunpack.c.l.b16 %v166
    %v942 = vunpack.c.l.b16 %v167
    %v943 = vunpack.c.l.b16 %v168
    %v944 = vunpack.c.l.b16 %v169
    %v945 = vunpack.c.l.b16 %v170
    %v946 = vunpack.c.l.b16 %v171
    %v947 = vunpack.c.l.b16 %v172
    %v948 = vunpack.c.l.b16 %v173
    %v949 = vunpack.c.l.b16 %v174
    %v950 = vunpack.c.l.b16 %v175
    %v951 = vunpack.c.l.b16 %v176
    %v952 = vunpack.c.l.b16 %v177
    %v953 = vunpack.c.l.b16 %v178
    %v954 = vunpack.c.l.b16 %v179
    %v955 = vunpack.c.l.b16 %v180
    %v956 = vunpack.c.l.b16 %v181
    %v957 = vunpack.c.l.b16 %v182
    %v958 = vunpack.c.l.b16 %v183
    %v959 = vunpack.c.l.b16 %v184
    %v960 = vunpack.c.l.b16 %v185
    %v961 = vunpack.c.l.b16 %v186
    %v962 = vunpack.c.l.b16 %v187
    %v963 = vunpack.c.l.b16 %v188
    %v964 = vunpack.c.l.b16 %v189
    %v965 = vunpack.c.l.b16 %v190
    %v966 = vunpack.c.l.b16 %v191
    %v967 = vunpack.c.l.b16 %v192
    %v968 = vunpack.c.l.b16 %v193
    %v969 = vunpack.c.l.b16 %v194
    %v970 = vunpack.c.l.b16 %v195
    %v971 = vunpack.c.l.b16 %v196
    %v972 = vunpack.c.l.b16 %v197
    %v973 = vunpack.c.l.b16 %v198
    %v974 = vunpack.c.l.b16 %v199
    %v975 = vunpack.c.l.b16 %v200
    %v976 = vunpack.c.l.b16 %v201
    %v977 = vunpack.c.l.b16 %v202
    %v978 = vunpack.c.l.b16 %v203
    %v979 = vunpack.c.l.b16 %v204
    %v980 = vunpack.c.l.b16 %v205
    %v981 = vunpack.c.l.b16 %v206
    %v982 = vunpack.c.l.b16 %v207
    %v983 = vunpack.c.l.b16 %v208
    %v984 = vunpack.c.l.b16 %v209
    %v985 = vunpack.c.l.b16 %v210
    %v986 = vunpack.c.l.b16 %v211
    %v987 = vunpack.c.l.b16 %v212
    %v988 = vunpack.c.l.b16 %v213
    %v989 = vunpack.c.l.b16 %v214
    %v990 = vunpack.c.l.b16 %v215
    %v991 = vunpack.c.l.b16 %v216
    %v992 = vunpack.c.l.b16 %v217
    %v993 = vunpack.c.l.b16 %v218
    %v994 = vunpack.c.l.b16 %v219
    %v995 = vunpack.c.l.b16 %v220
    %v996 = vunpack.c.l.b16 %v221
    %v997 = vunpack.c.l.b16 %v222
    %v998 = vunpack.c.l.b16 %v223
    %v999 = vunpack.c.l.b16 %v224
    %v1000 = vunpack.c.l.b16 %v225
    %v1001 = vunpack.c.l.b16 %v226
    %v1002 = vunpack.c.l.b16 %v227
    %v1003 = vunpack.c.l.b16 %v228
    %v1004 = vunpack.c.l.b16 %v229
    %v1005 = vunpack.c.l.b16 %v230
    %v1006 = vunpack.c.l.b16 %v231
    %v1007 = vunpack.c.l.b16 %v232
    %v1008 = vunpack.c.l.b16 %v233
    %v1009 = vunpack.c.l.b16 %v234
    %v1010 = vunpack.c.l.b16 %v235
    %v1011 = vunpack.c.l.b16 %v236
    %v1012 = vunpack.c.l.b16 %v237
    %v1013 = vunpack.c.l.b16 %v238
    %v1014 = vunpack.c.l.b16 %v239
    %v1015 = vunpack.c.l.b16 %v240
    %v1016 = vunpack.c.l.b16 %v241
    %v1017 = vunpack.c.l.b16 %v242
    %v1018 = vunpack.c.l.b16 %v243
    %v1019 = vunpack.c.l.b16 %v244
    %v1020 = vunpack.c.l.b16 %v245
    %v1021 = vunpack.c.l.b16 %v246
    %v1022 = vunpack.c.l.b16 %v247
    %v1023 = vunpack.c.l.b16 %v248
    %v1024 = vunpack.c.l.b16 %v249
    %v1025 = vunpack.c.l.b16 %v250
    %v1026 = vunpack.c.l.b16 %v251
    %v1027 = vunpack.c.l.b16 %v252
    %v1028 = vunpack.c.l.b16 %v253
    %v1029 = vunpack.c.l.b16 %v254
    %v1030 = vunpack.c.l.b16 %v255
    %v1031 = vunpack.c.l.b16 %v256
    %v1032 = vunpack.c.l.b16 %v257
    %v1033 = vunpack.c.l.b16 %v258
    %v1034 = vunpack.c.l.b16 %v259
    %v1035 = vunpack.c.l.b16 %v260
    %v1036 = vunpack.c.l.b16 %v261
    %v1037 = vunpack.c.l.b16 %v262
    %v1038 = vunpack.c.l.b16 %v263
    %v1039 = vunpack.c.l.b16 %v264
    %v1040 = vunpack.c.l.b16 %v265
    %v1041 = vunpack.c.l.b16 %v266
    %v1042 = vunpack.c.l.b16 %v267
    %v1043 = vunpack.c.l.b16 %v268
    %v1044 = vunpack.c.l.b16 %v269
    %v1045 = vunpack.c.l.b16 %v270
    %v1046 = vunpack.c.l.b16 %v271
    %v1047 = vunpack.c.l.b16 %v272
    %v1048 = vunpack.c.l.b16 %v273
    %v1049 = vunpack.c.l.b16 %v274
    %v1050 = vunpack.c.l.b16 %v275
    %v1051 = vunpack.c.l.b16 %v276
    %v1052 = vunpack.c.l.b16 %v277
    %v1053 = vunpack.c.l.b16 %v278
    %v1054 = vunpack.c.l.b16 %v279
    %v1055 = vunpack.c.l.b16 %v280
    %v1056 = vunpack.c.l.b16 %v281
    %v1057 = vunpack.c.l.b16 %v282
    %v1058 = vunpack.c.l.b16 %v283
    %v1059 = vunpack.c.l.b16 %v284
    %v1060 = vunpack.c.l.b16 %v285
    %v1061 = vunpack.c.l.b16 %v286
    %v1062 = vunpack.c.l.b16 %v287
    %v1063 = vunpack.c.l.b16 %v288
    %v1064 = vunpack.c.l.b16 %v289
    %v1065 = vunpack.c.l.b16 %v290
    %v1066 = vunpack.c.l.b16 %v291
    %v1067 = vunpack.c.l.b16 %v292
    %v1068 = vunpack.c.l.b16 %v293
    %v1069 = vunpack.c.l.b16 %v294
    %v1070 = vunpack.c.l.b16 %v295
    %v1071 = vunpack.c.l.b16 %v296
    %v1072 = vunpack.c.l.b16 %v297
    %v1073 = vunpack.c.l.b16 %v298
    %v1074 = vunpack.c.l.b16 %v299
    %v1075 = vunpack.c.l.b16 %v300
    %v1076 = vunpack.c.l.b16 %v301
    %v1077 = vunpack.c.l.b16 %v302
    %v1078 = vunpack.c.l.b16 %v303
    %v1079 = vunpack.c.l.b16 %v304
    %v1080 = vunpack.c.l.b16 %v305
    %v1081 = vunpack.c.l.b16 %v306
    %v1082 = vunpack.c.l.b16 %v307
    %v1083 = vunpack.c.l.b16 %v308
    %v1084 = vunpack.c.l.b16 %v309
    %v1085 = vunpack.c.l.b16 %v310
    %v1086 = vunpack.c.l.b16 %v311
    %v1087 = vunpack.c.l.b16 %v312
    %v1088 = vunpack.c.l.b16 %v313
    %v1089 = vunpack.c.l.b16 %v314
    %v1090 = vunpack.c.l.b16 %v315
    %v1091 = vunpack.c.l.b16 %v316
    %v1092 = vunpack.c.l.b16 %v317
    %v1093 = vunpack.c.l.b16 %v318
    %v1094 = vunpack.c.l.b16 %v319
    %v1095 = vunpack.c.l.b16 %v320
    %v1096 = vunpack.c.l.b16 %v321
    %v1097 = vunpack.c.l.b16 %v322
    %v1098 = vunpack.c.l.b16 %v323
    %v1099 = vunpack.c.l.b16 %v324
    %v1100 = vunpack.c.l.b16 %v325
    %v1101 = vunpack.c.l.b16 %v326
    %v1102 = vunpack.c.l.b16 %v327
    %v1103 = vunpack.c.l.b16 %v328
    %v1104 = vunpack.c.l.b16 %v329
    %v1105 = vunpack.c.l.b16 %v330
    %v1106 = vunpack.c.l.b16 %v331
    %v1107 = vunpack.c.l.b16 %v332
    %v1108 = vunpack.c.l.b16 %v333
    %v1109 = vunpack.c.l.b16 %v334
    %v1110 = vunpack.c.l.b16 %v335
    %v1111 = vunpack.c.l.b16 %v336
    %v1112 = vunpack.c.l.b16 %v337
    %v1113 = vunpack.c.l.b16 %v338
    %v1114 = vunpack.c.l.b16 %v339
    %v1115 = vunpack.c.l.b16 %v340
    %v1116 = vunpack.c.l.b16 %v341
    %v1117 = vunpack.c.l.b16 %v342
    %v1118 = vunpack.c.l.b16 %v343
    %v1119 = vunpack.c.l.b16 %v344
    %v1120 = vunpack.c.l.b16 %v345
    %v1121 = vunpack.c.l.b16 %v346
    %v1122 = vunpack.c.l.b16 %v347
    %v1123 = vunpack.c.l.b16 %v348
    %v1124 = vunpack.c.l.b16 %v349
    %v1125 = vunpack.c.l.b16 %v350
    %v1126 = vunpack.c.l.b16 %v351
    %v1127 = vunpack.c.l.b16 %v352
    %v1128 = vunpack.c.l.b16 %v353
    %v1129 = vunpack.c.l.b16 %v354
    %v1130 = vunpack.c.l.b16 %v355
    %v1131 = vunpack.c.l.b16 %v356
    %v1132 = vunpack.c.l.b16 %v357
    %v1133 = vunpack.c.l.b16 %v358
    %v1134 = vunpack.c.l.b16 %v359
    %v1135 = vunpack.c.l.b16 %v360
    %v1136 = vunpack.c.l.b16 %v361
    %v1137 = vunpack.c.l.b16 %v362
    %v1138 = vunpack.c.l.b16 %v363
    %v1139 = vunpack.c.l.b16 %v364
    %v1140 = vunpack.c.l.b16 %v365
    %v1141 = vunpack.c.l.b16 %v366
    %v1142 = vunpack.c.l.b16 %v367
    %v1143 = vunpack.c.l.b16 %v368
    %v1144 = vunpack.c.l.b16 %v369
    %v1145 = vunpack.c.l.b16 %v370
    %v1146 = vunpack.c.l.b16 %v371
    %v1147 = vunpack.c.l.b16 %v372
    %v1148 = vunpack.c.l.b16 %v373
    %v1149 = vunpack.c.l.b16 %v374
    %v1150 = vunpack.c.l.b16 %v375
    %v1151 = vunpack.c.l.b16 %v376
    %v1152 = vunpack.c.l.b16 %v377
    %v1153 = vunpack.c.l.b16 %v378
    %v1154 = vunpack.c.l.b16 %v379
    %v1155 = vunpack.c.l.b16 %v380
    %v1156 = vunpack.c.l.b16 %v381
    %v1157 = vunpack.c.l.b16 %v382
    %v1158 = vunpack.c.l.b16 %v383
    %v1159 = vunpack.c.l.b16 %v384
    %v1160 = vunpack.c.l.b16 %v385
    %v1161 = vunpack.c.l.b16 %v386
    %v1162 = vunpack.c.l.b16 %v387
    %v1163 = vunpack.c.l.b16 %v388
    %v1164 = vunpack.c.l.b16 %v389
    %v1165 = vunpack.c.l.b16 %v390
    %v1166 = vunpack.c.l.b16 %v391
    %v1167 = vunpack.c.l.b16 %v392
    %v1168 = vunpack.c.l.b16 %v393
    %v1169 = vunpack.c.l.b16 %v394
    %v1170 = vunpack.c.l.b16 %v395
    %v1171 = vunpack.c.l.b16 %v396
    %v1172 = vunpack.c.l.b16 %v397
    %v1173 = vunpack.c.l.b16 %v398
    %v1174 = vunpack.c.l.b16 %v399
    %v1175 = vunpack.c.l.b16 %v400
    %v1176 = vunpack.c.l.b16 %v401
    %v1177 = vunpack.c.l.b16 %v402
    %v1178 = vunpack.c.l.b16 %v403
    %v1179 = vunpack.c.l.b16 %v404
    %v1180 = vunpack.c.l.b16 %v405
    %v1181 = vunpack.c.l.b16 %v406
    %v1182 = vunpack.c.l.b16 %v407
    %v1183 = vunpack.c.l.b16 %v408
    %v1184 = vunpack.c.l.b16 %v409
    %v1185 = vunpack.c.l.b16 %v410
    %v1186 = vunpack.c.l.b16 %v411
    %v1187 = vunpack.c.l.b16 %v412
    %v1188 = vunpack.c.l.b16 %v413
    %v1189 = vunpack.c.l.b16 %v414
    %v1190 = vunpack.c.l.b16 %v415
    %v1191 = vunpack.c.l.b16 %v416
    %v1192 = vunpack.c.l.b16 %v417
    %v1193 = vunpack.c.l.b16 %v418
    %v1194 = vunpack.c.l.b16 %v419
    %v1195 = vunpack.c.l.b16 %v420
    %v1196 = vunpack.c.l.b16 %v421
    %v1197 = vunpack.c.l.b16 %v422
    %v1198 = vunpack.c.l.b16 %v423
    %v1199 = vunpack.c.l.b16 %v424
    %v1200 = vunpack.c.l.b16 %v425
    %v1201 = vunpack.c.l.b16 %v426
    %v1202 = vunpack.c.l.b16 %v427
    %v1203 = vunpack.c.l.b16 %v428
    %v1204 = vunpack.c.l.b16 %v429
    %v1205 = vunpack.c.l.b16 %v430
    %v1206 = vunpack.c.l.b16 %v431
    %v1207 = vunpack.c.l.b16 %v432
    %v1208 = vunpack.c.l.b16 %v433
    %v1209 = vunpack.c.l.b16 %v434
    %v1210 = vunpack.c.l.b16 %v435
    %v1211 = vunpack.c.l.b16 %v436
    %v1212 = vunpack.c.l.b16 %v437
    %v1213 = vunpack.c.l.b16 %v438
    %v1214 = vunpack.c.l.b16 %v439
    %v1215 = vunpack.c.l.b16 %v440
    %v1216 = vunpack.c.l.b16 %v441
    %v1217 = vunpack.c.l.b16 %v442
    %v1218 = vunpack.c.l.b16 %v443
    %v1219 = vunpack.c.l.b16 %v444
    %v1220 = vunpack.c.l.b16 %v445
    %v1221 = vunpack.c.l.b16 %v446
    %v1222 = vunpack.c.l.b16 %v447
    %v1223 = vunpack.c.l.b16 %v448
    %v1224 = vunpack.c.l.b16 %v449
    %v1225 = vunpack.c.l.b16 %v450
    %v1226 = vunpack.c.l.b16 %v451
    %v1227 = vunpack.c.l.b16 %v452
    %v1228 = vunpack.c.l.b16 %v453
    %v1229 = vunpack.c.l.b16 %v454
    %v1230 = vunpack.c.l.b16 %v455
    %v1231 = vunpack.c.l.b16 %v456
    %v1232 = vunpack.c.l.b16 %v457
    %v1233 = vunpack.c.l.b16 %v458
    %v1234 = vunpack.c.l.b16 %v459
    %v1235 = vunpack.c.l.b16 %v460
    %v1236 = vunpack.c.l.b16 %v461
    %v1237 = vunpack.c.l.b16 %v462
    %v1238 = vunpack.c.l.b16 %v463
    %v1239 = vunpack.c.l.b16 %v464
    %v1240 = vunpack.c.l.b16 %v465
    %v1241 = vunpack.c.l.b16 %v466
    %v1242 = vunpack.c.l.b16 %v467
    %v1243 = vunpack.c.l.b16 %v468
    %v1244 = vunpack.c.l.b16 %v469
    %v1245 = vunpack.c.l.b16 %v470
    %v1246 = vunpack.c.l.b16 %v471
    %v1247 = vunpack.c.l.b16 %v472
    %v1248 = vunpack.c.l.b16 %v473
    %v1249 = vunpack.c.l.b16 %v474
    %v1250 = vunpack.c.l.b16 %v475
    %v1251 = vunpack.c.l.b16 %v476
    %v1252 = vunpack.c.l.b16 %v477
    %v1253 = vunpack.c.l.b16 %v478
    %v1254 = vunpack.c.l.b16 %v479
    %v1255 = vunpack.c.l.b16 %v480
    %v1256 = vunpack.c.l.b16 %v481
    %v1257 = vunpack.c.l.b16 %v482
    %v1258 = vunpack.c.l.b16 %v483
    %v1259 = vunpack.c.l.b16 %v484
    %v1260 = vunpack.c.l.b16 %v485
    %v1261 = vunpack.c.l.b16 %v486
    %v1262 = vunpack.c.l.b16 %v487
    %v1263 = vunpack.c.l.b16 %v488
    %v1264 = vunpack.c.l.b16 %v489
    %v1265 = vunpack.c.l.b16 %v490
    %v1266 = vunpack.c.l.b16 %v491
    %v1267 = vunpack.c.l.b16 %v492
    %v1268 = vunpack.c.l.b16 %v493
    %v1269 = vunpack.c.l.b16 %v494
    %v1270 = vunpack.c.l.b16 %v495
    %v1271 = vunpack.c.l.b16 %v496
    %v1272 = vunpack.c.l.b16 %v497
    %v1273 = vunpack.c.l.b16 %v498
    %v1274 = vunpack.c.l.b16 %v499
    %v1275 = vunpack.c.l.b16 %v500
    %v1276 = vunpack.c.l.b16 %v501
    %v1277 = vunpack.c.l.b16 %v502
    %v1278 = vunpack.c.l.b16 %v503
    %v1279 = vunpack.c.l.b16 %v504
    %v1280 = vunpack.c.l.b16 %v505
    %v1281 = vunpack.c.l.b16 %v506
    %v1282 = vunpack.c.l.b16 %v507
    %v1283 = vunpack.c.l.b16 %v508
    %v1284 = vunpack.c.l.b16 %v509
    %v1285 = vunpack.c.l.b16 %v510
    %v1286 = vunpack.c.l.b16 %v511
    %v1287 = vunpack.c.l.b16 %v512
    %v1288 = vunpack.c.l.b16 %v513
    %v1289 = vunpack.c.l.b16 %v514
    %v1290 = vunpack.c.l.b16 %v515
    %v1291 = vunpack.c.l.b16 %v516
    %v1292 = vunpack.c.l.b16 %v517
    %v1293 = vunpack.c.l.b16 %v518
    %v1294 = vunpack.c.l.b16 %v519
    %v1295 = vunpack.c.l.b16 %v520
    %v1296 = vunpack.c.l.b16 %v521
    %v1297 = vunpack.c.l.b16 %v522
    %v1298 = vunpack.c.l.b16 %v523
    %v1299 = vunpack.c.l.b16 %v524
    %v1300 = vunpack.c.l.b16 %v525
    %v1301 = vunpack.c.l.b16 %v526
    %v1302 = vunpack.c.l.b16 %v527
    %v1303 = vunpack.c.l.b16 %v528
    %v1304 = vunpack.c.l.b16 %v529
    %v1305 = vunpack.c.l.b16 %v530
    %v1306 = vpack.c.b16 %v923, %v922
    %v1307 = vpack.c.b16 %v925, %v924
    %v1308 = vpack.c.b16 %v927, %v926
    %v1309 = vpack.c.b16 %v929, %v928
    %v1310 = vpack.c.b16 %v931, %v930
    %v1311 = vpack.c.b16 %v933, %v932
    %v1312 = vpack.c.b16 %v935, %v934
    %v1313 = vpack.c.b16 %v937, %v936
    %v1314 = vpack.c.b16 %v939, %v938
    %v1315 = vpack.c.b16 %v941, %v940
    %v1316 = vpack.c.b16 %v943, %v942
    %v1317 = vpack.c.b16 %v945, %v944
    %v1318 = vpack.c.b16 %v947, %v946
    %v1319 = vpack.c.b16 %v949, %v948
    %v1320 = vpack.c.b16 %v951, %v950
    %v1321 = vpack.c.b16 %v953, %v952
    %v1322 = vpack.c.b16 %v955, %v954
    %v1323 = vpack.c.b16 %v957, %v956
    %v1324 = vpack.c.b16 %v959, %v958
    %v1325 = vpack.c.b16 %v961, %v960
    %v1326 = vpack.c.b16 %v963, %v962
    %v1327 = vpack.c.b16 %v965, %v964
    %v1328 = vpack.c.b16 %v967, %v966
    %v1329 = vpack.c.b16 %v969, %v968
    %v1330 = vpack.c.b16 %v971, %v970
    %v1331 = vpack.c.b16 %v973, %v972
    %v1332 = vpack.c.b16 %v975, %v974
    %v1333 = vpack.c.b16 %v977, %v976
    %v1334 = vpack.c.b16 %v979, %v978
    %v1335 = vpack.c.b16 %v981, %v980
    %v1336 = vpack.c.b16 %v983, %v982
    %v1337 = vpack.c.b16 %v985, %v984
    %v1338 = vpack.c.b16 %v987, %v986
    %v1339 = vpack.c.b16 %v989, %v988
    %v1340 = vpack.c.b16 %v991, %v990
    %v1341 = vpack.c.b16 %v993, %v992
    %v1342 = vpack.c.b16 %v995, %v994
    %v1343 = vpack.c.b16 %v997, %v996
    %v1344 = vpack.c.b16 %v999, %v998
    %v1345 = vpack.c.b16 %v1001, %v1000
    %v1346 = vpack.c.b16 %v1003, %v1002
    %v1347 = vpack.c.b16 %v1005, %v1004
    %v1348 = vpack.c.b16 %v1007, %v1006
    %v1349 = vpack.c.b16 %v1009, %v1008
    %v1350 = vpack.c.b16 %v1011, %v1010
    %v1351 = vpack.c.b16 %v1013, %v1012
    %v1352 = vpack.c.b16 %v1015, %v1014
    %v1353 = vpack.c.b16 %v1017, %v1016
    %v1354 = vpack.c.b16 %v1019, %v1018
    %v1355 = vpack.c.b16 %v1021, %v1020
    %v1356 = vpack.c.b16 %v1023, %v1022
    %v1357 = vpack.c.b16 %v1025, %v1024
    %v1358 = vpack.c.b16 %v1027, %v1026
    %v1359 = vpack.c.b16 %v1029, %v1028
    %v1360 = vpack.c.b16 %v1031, %v1030
    %v1361 = vpack.c.b16 %v1033, %v1032
    %v1362 = vpack.c.b16 %v1035, %v1034
    %v1363 = vpack.c.b16 %v1037, %v1036
    %v1364 = vpack.c.b16 %v1039, %v1038
    %v1365 = vpack.c.b16 %v1041, %v1040
    %v1366 = vpack.c.b16 %v1043, %v1042
    %v1367 = vpack.c.b16 %v1045, %v1044
    %v1368 = vpack.c.b16 %v1047, %v1046
    %v1369 = vpack.c.b16 %v1049, %v1048
    %v1370 = vpack.c.b16 %v1051, %v1050
    %v1371 = vpack.c.b16 %v1053, %v1052
    %v1372 = vpack.c.b16 %v1055, %v1054
    %v1373 = vpack.c.b16 %v1057, %v1056
    %v1374 = vpack.c.b16 %v1059, %v1058
    %v1375 = vpack.c.b16 %v1061, %v1060
    %v1376 = vpack.c.b16 %v1063, %v1062
    %v1377 = vpack.c.b16 %v1065, %v1064
    %v1378 = vpack.c.b16 %v1067, %v1066
    %v1379 = vpack.c.b16 %v1069, %v1068
    %v1380 = vpack.c.b16 %v1071, %v1070
    %v1381 = vpack.c.b16 %v1073, %v1072
    %v1382 = vpack.c.b16 %v1075, %v1074
    %v1383 = vpack.c.b16 %v1077, %v1076
    %v1384 = vpack.c.b16 %v1079, %v1078
    %v1385 = vpack.c.b16 %v1081, %v1080
    %v1386 = vpack.c.b16 %v1083, %v1082
    %v1387 = vpack.c.b16 %v1085, %v1084
    %v1388 = vpack.c.b16 %v1087, %v1086
    %v1389 = vpack.c.b16 %v1089, %v1088
    %v1390 = vpack.c.b16 %v1091, %v1090
    %v1391 = vpack.c.b16 %v1093, %v1092
    %v1392 = vpack.c.b16 %v1095, %v1094
    %v1393 = vpack.c.b16 %v1097, %v1096
    %v1394 = vpack.c.b16 %v1099, %v1098
    %v1395 = vpack.c.b16 %v1101, %v1100
    %v1396 = vpack.c.b16 %v1103, %v1102
    %v1397 = vpack.c.b16 %v1105, %v1104
    %v1398 = vpack.c.b16 %v1107, %v1106
    %v1399 = vpack.c.b16 %v1109, %v1108
    %v1400 = vpack.c.b16 %v1111, %v1110
    %v1401 = vpack.c.b16 %v1113, %v1112
    %v1402 = vpack.c.b16 %v1115, %v1114
    %v1403 = vpack.c.b16 %v1117, %v1116
    %v1404 = vpack.c.b16 %v1119, %v1118
    %v1405 = vpack.c.b16 %v1121, %v1120
    %v1406 = vpack.c.b16 %v1123, %v1122
    %v1407 = vpack.c.b16 %v1125, %v1124
    %v1408 = vpack.c.b16 %v1127, %v1126
    %v1409 = vpack.c.b16 %v1129, %v1128
    %v1410 = vpack.c.b16 %v1131, %v1130
    %v1411 = vpack.c.b16 %v1133, %v1132
    %v1412 = vpack.c.b16 %v1135, %v1134
    %v1413 = vpack.c.b16 %v1137, %v1136
    %v1414 = vpack.c.b16 %v1139, %v1138
    %v1415 = vpack.c.b16 %v1141, %v1140
    %v1416 = vpack.c.b16 %v1143, %v1142
    %v1417 = vpack.c.b16 %v1145, %v1144
    %v1418 = vpack.c.b16 %v1147, %v1146
    %v1419 = vpack.c.b16 %v1149, %v1148
    %v1420 = vpack.c.b16 %v1151, %v1150
    %v1421 = vpack.c.b16 %v1153, %v1152
    %v1422 = vpack.c.b16 %v1155, %v1154
    %v1423 = vpack.c.b16 %v1157, %v1156
    %v1424 = vpack.c.b16 %v1159, %v1158
    %v1425 = vpack.c.b16 %v1161, %v1160
    %v1426 = vpack.c.b16 %v1163, %v1162
    %v1427 = vpack.c.b16 %v1165, %v1164
    %v1428 = vpack.c.b16 %v1167, %v1166
    %v1429 = vpack.c.b16 %v1169, %v1168
    %v1430 = vpack.c.b16 %v1171, %v1170
    %v1431 = vpack.c.b16 %v1173, %v1172
    %v1432 = vpack.c.b16 %v1175, %v1174
    %v1433 = vpack.c.b16 %v1177, %v1176
    %v1434 = vpack.c.b16 %v1179, %v1178
    %v1435 = vpack.c.b16 %v1181, %v1180
    %v1436 = vpack.c.b16 %v1183, %v1182
    %v1437 = vpack.c.b16 %v1185, %v1184
    %v1438 = vpack.c.b16 %v1187, %v1186
    %v1439 = vpack.c.b16 %v1189, %v1188
    %v1440 = vpack.c.b16 %v1191, %v1190
    %v1441 = vpack.c.b16 %v1193, %v1192
    %v1442 = vpack.c.b16 %v1195, %v1194
    %v1443 = vpack.c.b16 %v1197, %v1196
    %v1444 = vpack.c.b16 %v1199, %v1198
    %v1445 = vpack.c.b16 %v1201, %v1200
    %v1446 = vpack.c.b16 %v1203, %v1202
    %v1447 = vpack.c.b16 %v1205, %v1204
    %v1448 = vpack.c.b16 %v1207, %v1206
    %v1449 = vpack.c.b16 %v1209, %v1208
    %v1450 = vpack.c.b16 %v1211, %v1210
    %v1451 = vpack.c.b16 %v1213, %v1212
    %v1452 = vpack.c.b16 %v1215, %v1214
    %v1453 = vpack.c.b16 %v1217, %v1216
    %v1454 = vpack.c.b16 %v1219, %v1218
    %v1455 = vpack.c.b16 %v1221, %v1220
    %v1456 = vpack.c.b16 %v1223, %v1222
    %v1457 = vpack.c.b16 %v1225, %v1224
    %v1458 = vpack.c.b16 %v1227, %v1226
    %v1459 = vpack.c.b16 %v1229, %v1228
    %v1460 = vpack.c.b16 %v1231, %v1230
    %v1461 = vpack.c.b16 %v1233, %v1232
    %v1462 = vpack.c.b16 %v1235, %v1234
    %v1463 = vpack.c.b16 %v1237, %v1236
    %v1464 = vpack.c.b16 %v1239, %v1238
    %v1465 = vpack.c.b16 %v1241, %v1240
    %v1466 = vpack.c.b16 %v1243, %v1242
    %v1467 = vpack.c.b16 %v1245, %v1244
    %v1468 = vpack.c.b16 %v1247, %v1246
    %v1469 = vpack.c.b16 %v1249, %v1248
    %v1470 = vpack.c.b16 %v1251, %v1250
    %v1471 = vpack.c.b16 %v1253, %v1252
    %v1472 = vpack.c.b16 %v1255, %v1254
    %v1473 = vpack.c.b16 %v1257, %v1256
    %v1474 = vpack.c.b16 %v1259, %v1258
    %v1475 = vpack.c.b16 %v1261, %v1260
    %v1476 = vpack.c.b16 %v1263, %v1262
    %v1477 = vpack.c.b16 %v1265, %v1264
    %v1478 = vpack.c.b16 %v1267, %v1266
    %v1479 = vpack.c.b16 %v1269, %v1268
    %v1480 = vpack.c.b16 %v1271, %v1270
    %v1481 = vpack.c.b16 %v1273, %v1272
    %v1482 = vpack.c.b16 %v1275, %v1274
    %v1483 = vpack.c.b16 %v1277, %v1276
    %v1484 = vpack.c.b16 %v1279, %v1278
    %v1485 = vpack.c.b16 %v1281, %v1280
    %v1486 = vpack.c.b16 %v1283, %v1282
    %v1487 = vpack.c.b16 %v1285, %v1284
    %v1488 = vpack.c.b16 %v1287, %v1286
    %v1489 = vpack.c.b16 %v1289, %v1288
    %v1490 = vpack.c.b16 %v1291, %v1290
    %v1491 = vpack.c.b16 %v1293, %v1292
    %v1492 = vpack.c.b16 %v1295, %v1294
    %v1493 = vpack.c.b16 %v1297, %v1296
    %v1494 = vpack.c.b16 %v1299, %v1298
    %v1495 = vpack.c.b16 %v1301, %v1300
    %v1496 = vpack.c.b16 %v1303, %v1302
    %v1497 = vpack.c.b16 %v1305, %v1304
    %1690 = vmatprep.subr.bf16.mxu0 0
    %1691 = vmatpush1.bf16.msra.mxu0 %v1306
    %1692 = vmatprep.subr.bf16.mxu0 0
    %1693 = vmatpush1.bf16.msra.mxu0 %v1307
    %1694 = vmatprep.subr.bf16.mxu0 0
    %1695 = vmatpush1.bf16.msra.mxu0 %v1308
    %1696 = vmatprep.subr.bf16.mxu0 0
    %1697 = vmatpush1.bf16.msra.mxu0 %v1309
    %1698 = vmatprep.subr.bf16.mxu0 0
    %1699 = vmatpush1.bf16.msra.mxu0 %v1310
    %1700 = vmatprep.subr.bf16.mxu0 0
    %1701 = vmatpush1.bf16.msra.mxu0 %v1311
    %1702 = vmatprep.subr.bf16.mxu0 0
    %1703 = vmatpush1.bf16.msra.mxu0 %v1312
    %1704 = vmatprep.subr.bf16.mxu0 0
    %1705 = vmatpush1.bf16.msra.mxu0 %v1313
    %1706 = vmatprep.subr.bf16.mxu0 0
    %1707 = vmatpush1.bf16.msra.mxu0 %v1314
    %1708 = vmatprep.subr.bf16.mxu0 0
    %1709 = vmatpush1.bf16.msra.mxu0 %v1315
    %1710 = vmatprep.subr.bf16.mxu0 0
    %1711 = vmatpush1.bf16.msra.mxu0 %v1316
    %1712 = vmatprep.subr.bf16.mxu0 0
    %1713 = vmatpush1.bf16.msra.mxu0 %v1317
    %1714 = vmatprep.subr.bf16.mxu0 0
    %1715 = vmatpush1.bf16.msra.mxu0 %v1318
    %1716 = vmatprep.subr.bf16.mxu0 0
    %1717 = vmatpush1.bf16.msra.mxu0 %v1319
    %1718 = vmatprep.subr.bf16.mxu0 0
    %1719 = vmatpush1.bf16.msra.mxu0 %v1320
    %1720 = vmatprep.subr.bf16.mxu0 0
    %1721 = vmatpush1.bf16.msra.mxu0 %v1321
    %1722 = vmatprep.mubr.bf16.mxu0 %v124
    %1723 = vmatmul.mubr.bf16.gmra.mrb[0].mxu0 %v123
    %v1724 = vpop.f32.mrb[0].mxu0
    %v1725 = vadd.f32 %v536, %v1724
    %v1726 = vpop.f32.mrb[0].mxu0
    %v1727 = vpop.f32.mrb[0].mxu0
    %v1728 = vpop.f32.mrb[0].mxu0
    %1729 = vdwg.mxu0
    %1730 = vmatprep.subr.bf16.mxu0 0
    %1731 = vmatpush1.bf16.msra.mxu0 %v1322
    %1732 = vmatprep.subr.bf16.mxu0 0
    %1733 = vmatpush1.bf16.msra.mxu0 %v1323
    %1734 = vmatprep.subr.bf16.mxu0 0
    %1735 = vmatpush1.bf16.msra.mxu0 %v1324
    %1736 = vmatprep.subr.bf16.mxu0 0
    %1737 = vmatpush1.bf16.msra.mxu0 %v1325
    %1738 = vmatprep.subr.bf16.mxu0 0
    %1739 = vmatpush1.bf16.msra.mxu0 %v1326
    %1740 = vmatprep.subr.bf16.mxu0 0
    %1741 = vmatpush1.bf16.msra.mxu0 %v1327
    %1742 = vmatprep.subr.bf16.mxu0 0
    %1743 = vmatpush1.bf16.msra.mxu0 %v1328
    %1744 = vmatprep.subr.bf16.mxu0 0
    %1745 = vmatpush1.bf16.msra.mxu0 %v1329
    %1746 = vmatprep.subr.bf16.mxu0 0
    %1747 = vmatpush1.bf16.msra.mxu0 %v1330
    %1748 = vmatprep.subr.bf16.mxu0 0
    %1749 = vmatpush1.bf16.msra.mxu0 %v1331
    %1750 = vmatprep.subr.bf16.mxu0 0
    %1751 = vmatpush1.bf16.msra.mxu0 %v1332
    %1752 = vmatprep.subr.bf16.mxu0 0
    %1753 = vmatpush1.bf16.msra.mxu0 %v1333
    %1754 = vmatprep.subr.bf16.mxu0 0
    %1755 = vmatpush1.bf16.msra.mxu0 %v1334
    %1756 = vmatprep.subr.bf16.mxu0 0
    %1757 = vmatpush1.bf16.msra.mxu0 %v1335
    %1758 = vmatprep.subr.bf16.mxu0 0
    %1759 = vmatpush1.bf16.msra.mxu0 %v1336
    %1760 = vmatprep.subr.bf16.mxu0 0
    %1761 = vmatpush1.bf16.msra.mxu0 %v1337
    %1762 = vmatprep.mubr.bf16.mxu0 %v126
    %1763 = vmatmul.mubr.bf16.gmra.mrb[0].mxu0 %v125
    %v1764 = vpop.f32.mrb[0].mxu0
    %v1765 = vadd.f32 %v1725, %v1764
    %v1766 = vpop.f32.mrb[0].mxu0
    %v1767 = vpop.f32.mrb[0].mxu0
    %v1768 = vpop.f32.mrb[0].mxu0
    %1769 = vdwg.mxu0
    %1770 = vmatprep.subr.bf16.mxu0 0
    %1771 = vmatpush1.bf16.msra.mxu0 %v1338
    %1772 = vmatprep.subr.bf16.mxu0 0
    %1773 = vmatpush1.bf16.msra.mxu0 %v1339
    %1774 = vmatprep.subr.bf16.mxu0 0
    %1775 = vmatpush1.bf16.msra.mxu0 %v1340
    %1776 = vmatprep.subr.bf16.mxu0 0
    %1777 = vmatpush1.bf16.msra.mxu0 %v1341
    %1778 = vmatprep.subr.bf16.mxu0 0
    %1779 = vmatpush1.bf16.msra.mxu0 %v1342
    %1780 = vmatprep.subr.bf16.mxu0 0
    %1781 = vmatpush1.bf16.msra.mxu0 %v1343
    %1782 = vmatprep.subr.bf16.mxu0 0
    %1783 = vmatpush1.bf16.msra.mxu0 %v1344
    %1784 = vmatprep.subr.bf16.mxu0 0
    %1785 = vmatpush1.bf16.msra.mxu0 %v1345
    %1786 = vmatprep.subr.bf16.mxu0 0
    %1787 = vmatpush1.bf16.msra.mxu0 %v1346
    %1788 = vmatprep.subr.bf16.mxu0 0
    %1789 = vmatpush1.bf16.msra.mxu0 %v1347
    %1790 = vmatprep.subr.bf16.mxu0 0
    %1791 = vmatpush1.bf16.msra.mxu0 %v1348
    %1792 = vmatprep.subr.bf16.mxu0 0
    %1793 = vmatpush1.bf16.msra.mxu0 %v1349
    %1794 = vmatprep.subr.bf16.mxu0 0
    %1795 = vmatpush1.bf16.msra.mxu0 %v1350
    %1796 = vmatprep.subr.bf16.mxu0 0
    %1797 = vmatpush1.bf16.msra.mxu0 %v1351
    %1798 = vmatprep.subr.bf16.mxu0 0
    %1799 = vmatpush1.bf16.msra.mxu0 %v1352
    %1800 = vmatprep.subr.bf16.mxu0 0
    %1801 = vmatpush1.bf16.msra.mxu0 %v1353
    %1802 = vmatprep.mubr.bf16.mxu0 %v128
    %1803 = vmatmul.mubr.bf16.gmra.mrb[0].mxu0 %v127
    %v1804 = vpop.f32.mrb[0].mxu0
    %v1805 = vadd.f32 %v1765, %v1804
    %v1806 = vpop.f32.mrb[0].mxu0
    %v1807 = vpop.f32.mrb[0].mxu0
    %v1808 = vpop.f32.mrb[0].mxu0
    %1809 = vdwg.mxu0
    %1810 = vmatprep.subr.bf16.mxu0 0
    %1811 = vmatpush1.bf16.msra.mxu0 %v1354
    %1812 = vmatprep.subr.bf16.mxu0 0
    %1813 = vmatpush1.bf16.msra.mxu0 %v1355
    %1814 = vmatprep.subr.bf16.mxu0 0
    %1815 = vmatpush1.bf16.msra.mxu0 %v1356
    %1816 = vmatprep.subr.bf16.mxu0 0
    %1817 = vmatpush1.bf16.msra.mxu0 %v1357
    %1818 = vmatprep.subr.bf16.mxu0 0
    %1819 = vmatpush1.bf16.msra.mxu0 %v1358
    %1820 = vmatprep.subr.bf16.mxu0 0
    %1821 = vmatpush1.bf16.msra.mxu0 %v1359
    %1822 = vmatprep.subr.bf16.mxu0 0
    %1823 = vmatpush1.bf16.msra.mxu0 %v1360
    %1824 = vmatprep.subr.bf16.mxu0 0
    %1825 = vmatpush1.bf16.msra.mxu0 %v1361
    %1826 = vmatprep.subr.bf16.mxu0 0
    %1827 = vmatpush1.bf16.msra.mxu0 %v1362
    %1828 = vmatprep.subr.bf16.mxu0 0
    %1829 = vmatpush1.bf16.msra.mxu0 %v1363
    %1830 = vmatprep.subr.bf16.mxu0 0
    %1831 = vmatpush1.bf16.msra.mxu0 %v1364
    %1832 = vmatprep.subr.bf16.mxu0 0
    %1833 = vmatpush1.bf16.msra.mxu0 %v1365
    %1834 = vmatprep.subr.bf16.mxu0 0
    %1835 = vmatpush1.bf16.msra.mxu0 %v1366
    %1836 = vmatprep.subr.bf16.mxu0 0
    %1837 = vmatpush1.bf16.msra.mxu0 %v1367
    %1838 = vmatprep.subr.bf16.mxu0 0
    %1839 = vmatpush1.bf16.msra.mxu0 %v1368
    %1840 = vmatprep.subr.bf16.mxu0 0
    %1841 = vmatpush1.bf16.msra.mxu0 %v1369
    %1842 = vmatprep.mubr.bf16.mxu0 %v130
    %1843 = vmatmul.mubr.bf16.gmra.mrb[0].mxu0 %v129
    %v1844 = vpop.f32.mrb[0].mxu0
    %v1845 = vadd.f32 %v1805, %v1844
    %v1846 = vpop.f32.mrb[0].mxu0
    %v1847 = vpop.f32.mrb[0].mxu0
    %v1848 = vpop.f32.mrb[0].mxu0
    %1849 = vdwg.mxu0
    %1850 = vmatprep.subr.bf16.mxu0 0
    %1851 = vmatpush1.bf16.msra.mxu0 %v1370
    %1852 = vmatprep.subr.bf16.mxu0 0
    %1853 = vmatpush1.bf16.msra.mxu0 %v1371
    %1854 = vmatprep.subr.bf16.mxu0 0
    %1855 = vmatpush1.bf16.msra.mxu0 %v1372
    %1856 = vmatprep.subr.bf16.mxu0 0
    %1857 = vmatpush1.bf16.msra.mxu0 %v1373
    %1858 = vmatprep.subr.bf16.mxu0 0
    %1859 = vmatpush1.bf16.msra.mxu0 %v1374
    %1860 = vmatprep.subr.bf16.mxu0 0
    %1861 = vmatpush1.bf16.msra.mxu0 %v1375
    %1862 = vmatprep.subr.bf16.mxu0 0
    %1863 = vmatpush1.bf16.msra.mxu0 %v1376
    %1864 = vmatprep.subr.bf16.mxu0 0
    %1865 = vmatpush1.bf16.msra.mxu0 %v1377
    %1866 = vmatprep.subr.bf16.mxu0 0
    %1867 = vmatpush1.bf16.msra.mxu0 %v1378
    %1868 = vmatprep.subr.bf16.mxu0 0
    %1869 = vmatpush1.bf16.msra.mxu0 %v1379
    %1870 = vmatprep.subr.bf16.mxu0 0
    %1871 = vmatpush1.bf16.msra.mxu0 %v1380
    %1872 = vmatprep.subr.bf16.mxu0 0
    %1873 = vmatpush1.bf16.msra.mxu0 %v1381
    %1874 = vmatprep.subr.bf16.mxu0 0
    %1875 = vmatpush1.bf16.msra.mxu0 %v1382
    %1876 = vmatprep.subr.bf16.mxu0 0
    %1877 = vmatpush1.bf16.msra.mxu0 %v1383
    %1878 = vmatprep.subr.bf16.mxu0 0
    %1879 = vmatpush1.bf16.msra.mxu0 %v1384
    %1880 = vmatprep.subr.bf16.mxu0 0
    %1881 = vmatpush1.bf16.msra.mxu0 %v1385
    %1882 = vmatprep.mubr.bf16.mxu0 %v132
    %1883 = vmatmul.mubr.bf16.gmra.mrb[0].mxu0 %v131
    %v1884 = vpop.f32.mrb[0].mxu0
    %v1885 = vadd.f32 %v1845, %v1884
    %v1886 = vpop.f32.mrb[0].mxu0
    %v1887 = vpop.f32.mrb[0].mxu0
    %v1888 = vpop.f32.mrb[0].mxu0
    %1889 = vdwg.mxu0
    %1890 = vmatprep.subr.bf16.mxu0 0
    %1891 = vmatpush1.bf16.msra.mxu0 %v1386
    %1892 = vmatprep.subr.bf16.mxu0 0
    %1893 = vmatpush1.bf16.msra.mxu0 %v1387
    %1894 = vmatprep.subr.bf16.mxu0 0
    %1895 = vmatpush1.bf16.msra.mxu0 %v1388
    %1896 = vmatprep.subr.bf16.mxu0 0
    %1897 = vmatpush1.bf16.msra.mxu0 %v1389
    %1898 = vmatprep.subr.bf16.mxu0 0
    %1899 = vmatpush1.bf16.msra.mxu0 %v1390
    %1900 = vmatprep.subr.bf16.mxu0 0
    %1901 = vmatpush1.bf16.msra.mxu0 %v1391
    %1902 = vmatprep.subr.bf16.mxu0 0
    %1903 = vmatpush1.bf16.msra.mxu0 %v1392
    %1904 = vmatprep.subr.bf16.mxu0 0
    %1905 = vmatpush1.bf16.msra.mxu0 %v1393
    %1906 = vmatprep.subr.bf16.mxu0 0
    %1907 = vmatpush1.bf16.msra.mxu0 %v1394
    %1908 = vmatprep.subr.bf16.mxu0 0
    %1909 = vmatpush1.bf16.msra.mxu0 %v1395
    %1910 = vmatprep.subr.bf16.mxu0 0
    %1911 = vmatpush1.bf16.msra.mxu0 %v1396
    %1912 = vmatprep.subr.bf16.mxu0 0
    %1913 = vmatpush1.bf16.msra.mxu0 %v1397
    %1914 = vmatprep.subr.bf16.mxu0 0
    %1915 = vmatpush1.bf16.msra.mxu0 %v1398
    %1916 = vmatprep.subr.bf16.mxu0 0
    %1917 = vmatpush1.bf16.msra.mxu0 %v1399
    %1918 = vmatprep.subr.bf16.mxu0 0
    %1919 = vmatpush1.bf16.msra.mxu0 %v1400
    %1920 = vmatprep.subr.bf16.mxu0 0
    %1921 = vmatpush1.bf16.msra.mxu0 %v1401
    %1922 = vmatprep.mubr.bf16.mxu0 %v134
    %1923 = vmatmul.mubr.bf16.gmra.mrb[0].mxu0 %v133
    %v1924 = vpop.f32.mrb[0].mxu0
    %v1925 = vadd.f32 %v1885, %v1924
    %v1926 = vpop.f32.mrb[0].mxu0
    %v1927 = vpop.f32.mrb[0].mxu0
    %v1928 = vpop.f32.mrb[0].mxu0
    %1929 = vdwg.mxu0
    %1930 = vmatprep.subr.bf16.mxu0 0
    %1931 = vmatpush1.bf16.msra.mxu0 %v1402
    %1932 = vmatprep.subr.bf16.mxu0 0
    %1933 = vmatpush1.bf16.msra.mxu0 %v1403
    %1934 = vmatprep.subr.bf16.mxu0 0
    %1935 = vmatpush1.bf16.msra.mxu0 %v1404
    %1936 = vmatprep.subr.bf16.mxu0 0
    %1937 = vmatpush1.bf16.msra.mxu0 %v1405
    %1938 = vmatprep.subr.bf16.mxu0 0
    %1939 = vmatpush1.bf16.msra.mxu0 %v1406
    %1940 = vmatprep.subr.bf16.mxu0 0
    %1941 = vmatpush1.bf16.msra.mxu0 %v1407
    %1942 = vmatprep.subr.bf16.mxu0 0
    %1943 = vmatpush1.bf16.msra.mxu0 %v1408
    %1944 = vmatprep.subr.bf16.mxu0 0
    %1945 = vmatpush1.bf16.msra.mxu0 %v1409
    %1946 = vmatprep.subr.bf16.mxu0 0
    %1947 = vmatpush1.bf16.msra.mxu0 %v1410
    %1948 = vmatprep.subr.bf16.mxu0 0
    %1949 = vmatpush1.bf16.msra.mxu0 %v1411
    %1950 = vmatprep.subr.bf16.mxu0 0
    %1951 = vmatpush1.bf16.msra.mxu0 %v1412
    %1952 = vmatprep.subr.bf16.mxu0 0
    %1953 = vmatpush1.bf16.msra.mxu0 %v1413
    %1954 = vmatprep.subr.bf16.mxu0 0
    %1955 = vmatpush1.bf16.msra.mxu0 %v1414
    %1956 = vmatprep.subr.bf16.mxu0 0
    %1957 = vmatpush1.bf16.msra.mxu0 %v1415
    %1958 = vmatprep.subr.bf16.mxu0 0
    %1959 = vmatpush1.bf16.msra.mxu0 %v1416
    %1960 = vmatprep.subr.bf16.mxu0 0
    %1961 = vmatpush1.bf16.msra.mxu0 %v1417
    %1962 = vmatprep.mubr.bf16.mxu0 %v136
    %1963 = vmatmul.mubr.bf16.gmra.mrb[0].mxu0 %v135
    %v1964 = vpop.f32.mrb[0].mxu0
    %v1965 = vadd.f32 %v1925, %v1964
    %v1966 = vpop.f32.mrb[0].mxu0
    %v1967 = vpop.f32.mrb[0].mxu0
    %v1968 = vpop.f32.mrb[0].mxu0
    %1969 = vdwg.mxu0
    %1970 = vmatprep.subr.bf16.mxu0 0
    %1971 = vmatpush1.bf16.msra.mxu0 %v1418
    %1972 = vmatprep.subr.bf16.mxu0 0
    %1973 = vmatpush1.bf16.msra.mxu0 %v1419
    %1974 = vmatprep.subr.bf16.mxu0 0
    %1975 = vmatpush1.bf16.msra.mxu0 %v1420
    %1976 = vmatprep.subr.bf16.mxu0 0
    %1977 = vmatpush1.bf16.msra.mxu0 %v1421
    %1978 = vmatprep.subr.bf16.mxu0 0
    %1979 = vmatpush1.bf16.msra.mxu0 %v1422
    %1980 = vmatprep.subr.bf16.mxu0 0
    %1981 = vmatpush1.bf16.msra.mxu0 %v1423
    %1982 = vmatprep.subr.bf16.mxu0 0
    %1983 = vmatpush1.bf16.msra.mxu0 %v1424
    %1984 = vmatprep.subr.bf16.mxu0 0
    %1985 = vmatpush1.bf16.msra.mxu0 %v1425
    %1986 = vmatprep.subr.bf16.mxu0 0
    %1987 = vmatpush1.bf16.msra.mxu0 %v1426
    %1988 = vmatprep.subr.bf16.mxu0 0
    %1989 = vmatpush1.bf16.msra.mxu0 %v1427
    %1990 = vmatprep.subr.bf16.mxu0 0
    %1991 = vmatpush1.bf16.msra.mxu0 %v1428
    %1992 = vmatprep.subr.bf16.mxu0 0
    %1993 = vmatpush1.bf16.msra.mxu0 %v1429
    %1994 = vmatprep.subr.bf16.mxu0 0
    %1995 = vmatpush1.bf16.msra.mxu0 %v1430
    %1996 = vmatprep.subr.bf16.mxu0 0
    %1997 = vmatpush1.bf16.msra.mxu0 %v1431
    %1998 = vmatprep.subr.bf16.mxu0 0
    %1999 = vmatpush1.bf16.msra.mxu0 %v1432
    %2000 = vmatprep.subr.bf16.mxu0 0
    %2001 = vmatpush1.bf16.msra.mxu0 %v1433
    %2002 = vmatprep.mubr.bf16.mxu0 %v138
    %2003 = vmatmul.mubr.bf16.gmra.mrb[0].mxu0 %v137
    %v2004 = vpop.f32.mrb[0].mxu0
    %v2005 = vadd.f32 %v1965, %v2004
    %v2006 = vpop.f32.mrb[0].mxu0
    %v2007 = vpop.f32.mrb[0].mxu0
    %v2008 = vpop.f32.mrb[0].mxu0
    %2009 = vdwg.mxu0
    %2010 = vmatprep.subr.bf16.mxu0 0
    %2011 = vmatpush1.bf16.msra.mxu0 %v1434
    %2012 = vmatprep.subr.bf16.mxu0 0
    %2013 = vmatpush1.bf16.msra.mxu0 %v1435
    %2014 = vmatprep.subr.bf16.mxu0 0
    %2015 = vmatpush1.bf16.msra.mxu0 %v1436
    %2016 = vmatprep.subr.bf16.mxu0 0
    %2017 = vmatpush1.bf16.msra.mxu0 %v1437
    %2018 = vmatprep.subr.bf16.mxu0 0
    %2019 = vmatpush1.bf16.msra.mxu0 %v1438
    %2020 = vmatprep.subr.bf16.mxu0 0
    %2021 = vmatpush1.bf16.msra.mxu0 %v1439
    %2022 = vmatprep.subr.bf16.mxu0 0
    %2023 = vmatpush1.bf16.msra.mxu0 %v1440
    %2024 = vmatprep.subr.bf16.mxu0 0
    %2025 = vmatpush1.bf16.msra.mxu0 %v1441
    %2026 = vmatprep.subr.bf16.mxu0 0
    %2027 = vmatpush1.bf16.msra.mxu0 %v1442
    %2028 = vmatprep.subr.bf16.mxu0 0
    %2029 = vmatpush1.bf16.msra.mxu0 %v1443
    %2030 = vmatprep.subr.bf16.mxu0 0
    %2031 = vmatpush1.bf16.msra.mxu0 %v1444
    %2032 = vmatprep.subr.bf16.mxu0 0
    %2033 = vmatpush1.bf16.msra.mxu0 %v1445
    %2034 = vmatprep.subr.bf16.mxu0 0
    %2035 = vmatpush1.bf16.msra.mxu0 %v1446
    %2036 = vmatprep.subr.bf16.mxu0 0
    %2037 = vmatpush1.bf16.msra.mxu0 %v1447
    %2038 = vmatprep.subr.bf16.mxu0 0
    %2039 = vmatpush1.bf16.msra.mxu0 %v1448
    %2040 = vmatprep.subr.bf16.mxu0 0
    %2041 = vmatpush1.bf16.msra.mxu0 %v1449
    %2042 = vmatprep.mubr.bf16.mxu0 %v140
    %2043 = vmatmul.mubr.bf16.gmra.mrb[0].mxu0 %v139
    %v2044 = vpop.f32.mrb[0].mxu0
    %v2045 = vadd.f32 %v2005, %v2044
    %v2046 = vpop.f32.mrb[0].mxu0
    %v2047 = vpop.f32.mrb[0].mxu0
    %v2048 = vpop.f32.mrb[0].mxu0
    %2049 = vdwg.mxu0
    %2050 = vmatprep.subr.bf16.mxu0 0
    %2051 = vmatpush1.bf16.msra.mxu0 %v1450
    %2052 = vmatprep.subr.bf16.mxu0 0
    %2053 = vmatpush1.bf16.msra.mxu0 %v1451
    %2054 = vmatprep.subr.bf16.mxu0 0
    %2055 = vmatpush1.bf16.msra.mxu0 %v1452
    %2056 = vmatprep.subr.bf16.mxu0 0
    %2057 = vmatpush1.bf16.msra.mxu0 %v1453
    %2058 = vmatprep.subr.bf16.mxu0 0
    %2059 = vmatpush1.bf16.msra.mxu0 %v1454
    %2060 = vmatprep.subr.bf16.mxu0 0
    %2061 = vmatpush1.bf16.msra.mxu0 %v1455
    %2062 = vmatprep.subr.bf16.mxu0 0
    %2063 = vmatpush1.bf16.msra.mxu0 %v1456
    %2064 = vmatprep.subr.bf16.mxu0 0
    %2065 = vmatpush1.bf16.msra.mxu0 %v1457
    %2066 = vmatprep.subr.bf16.mxu0 0
    %2067 = vmatpush1.bf16.msra.mxu0 %v1458
    %2068 = vmatprep.subr.bf16.mxu0 0
    %2069 = vmatpush1.bf16.msra.mxu0 %v1459
    %2070 = vmatprep.subr.bf16.mxu0 0
    %2071 = vmatpush1.bf16.msra.mxu0 %v1460
    %2072 = vmatprep.subr.bf16.mxu0 0
    %2073 = vmatpush1.bf16.msra.mxu0 %v1461
    %2074 = vmatprep.subr.bf16.mxu0 0
    %2075 = vmatpush1.bf16.msra.mxu0 %v1462
    %2076 = vmatprep.subr.bf16.mxu0 0
    %2077 = vmatpush1.bf16.msra.mxu0 %v1463
    %2078 = vmatprep.subr.bf16.mxu0 0
    %2079 = vmatpush1.bf16.msra.mxu0 %v1464
    %2080 = vmatprep.subr.bf16.mxu0 0
    %2081 = vmatpush1.bf16.msra.mxu0 %v1465
    %2082 = vmatprep.mubr.bf16.mxu0 %v142
    %2083 = vmatmul.mubr.bf16.gmra.mrb[0].mxu0 %v141
    %v2084 = vpop.f32.mrb[0].mxu0
    %v2085 = vadd.f32 %v2045, %v2084
    %v2086 = vpop.f32.mrb[0].mxu0
    %v2087 = vpop.f32.mrb[0].mxu0
    %v2088 = vpop.f32.mrb[0].mxu0
    %2089 = vdwg.mxu0
    %2090 = vmatprep.subr.bf16.mxu0 0
    %2091 = vmatpush1.bf16.msra.mxu0 %v1466
    %2092 = vmatprep.subr.bf16.mxu0 0
    %2093 = vmatpush1.bf16.msra.mxu0 %v1467
    %2094 = vmatprep.subr.bf16.mxu0 0
    %2095 = vmatpush1.bf16.msra.mxu0 %v1468
    %2096 = vmatprep.subr.bf16.mxu0 0
    %2097 = vmatpush1.bf16.msra.mxu0 %v1469
    %2098 = vmatprep.subr.bf16.mxu0 0
    %2099 = vmatpush1.bf16.msra.mxu0 %v1470
    %2100 = vmatprep.subr.bf16.mxu0 0
    %2101 = vmatpush1.bf16.msra.mxu0 %v1471
    %2102 = vmatprep.subr.bf16.mxu0 0
    %2103 = vmatpush1.bf16.msra.mxu0 %v1472
    %2104 = vmatprep.subr.bf16.mxu0 0
    %2105 = vmatpush1.bf16.msra.mxu0 %v1473
    %2106 = vmatprep.subr.bf16.mxu0 0
    %2107 = vmatpush1.bf16.msra.mxu0 %v1474
    %2108 = vmatprep.subr.bf16.mxu0 0
    %2109 = vmatpush1.bf16.msra.mxu0 %v1475
    %2110 = vmatprep.subr.bf16.mxu0 0
    %2111 = vmatpush1.bf16.msra.mxu0 %v1476
    %2112 = vmatprep.subr.bf16.mxu0 0
    %2113 = vmatpush1.bf16.msra.mxu0 %v1477
    %2114 = vmatprep.subr.bf16.mxu0 0
    %2115 = vmatpush1.bf16.msra.mxu0 %v1478
    %2116 = vmatprep.subr.bf16.mxu0 0
    %2117 = vmatpush1.bf16.msra.mxu0 %v1479
    %2118 = vmatprep.subr.bf16.mxu0 0
    %2119 = vmatpush1.bf16.msra.mxu0 %v1480
    %2120 = vmatprep.subr.bf16.mxu0 0
    %2121 = vmatpush1.bf16.msra.mxu0 %v1481
    %2122 = vmatprep.mubr.bf16.mxu0 %v144
    %2123 = vmatmul.mubr.bf16.gmra.mrb[0].mxu0 %v143
    %v2124 = vpop.f32.mrb[0].mxu0
    %v2125 = vadd.f32 %v2085, %v2124
    %v2126 = vpop.f32.mrb[0].mxu0
    %v2127 = vpop.f32.mrb[0].mxu0
    %v2128 = vpop.f32.mrb[0].mxu0
    %2129 = vdwg.mxu0
    %2130 = vmatprep.subr.bf16.mxu0 0
    %2131 = vmatpush1.bf16.msra.mxu0 %v1482
    %2132 = vmatprep.subr.bf16.mxu0 0
    %2133 = vmatpush1.bf16.msra.mxu0 %v1483
    %2134 = vmatprep.subr.bf16.mxu0 0
    %2135 = vmatpush1.bf16.msra.mxu0 %v1484
    %2136 = vmatprep.subr.bf16.mxu0 0
    %2137 = vmatpush1.bf16.msra.mxu0 %v1485
    %2138 = vmatprep.subr.bf16.mxu0 0
    %2139 = vmatpush1.bf16.msra.mxu0 %v1486
    %2140 = vmatprep.subr.bf16.mxu0 0
    %2141 = vmatpush1.bf16.msra.mxu0 %v1487
    %2142 = vmatprep.subr.bf16.mxu0 0
    %2143 = vmatpush1.bf16.msra.mxu0 %v1488
    %2144 = vmatprep.subr.bf16.mxu0 0
    %2145 = vmatpush1.bf16.msra.mxu0 %v1489
    %2146 = vmatprep.subr.bf16.mxu0 0
    %2147 = vmatpush1.bf16.msra.mxu0 %v1490
    %2148 = vmatprep.subr.bf16.mxu0 0
    %2149 = vmatpush1.bf16.msra.mxu0 %v1491
    %2150 = vmatprep.subr.bf16.mxu0 0
    %2151 = vmatpush1.bf16.msra.mxu0 %v1492
    %2152 = vmatprep.subr.bf16.mxu0 0
    %2153 = vmatpush1.bf16.msra.mxu0 %v1493
    %2154 = vmatprep.subr.bf16.mxu0 0
    %2155 = vmatpush1.bf16.msra.mxu0 %v1494
    %2156 = vmatprep.subr.bf16.mxu0 0
    %2157 = vmatpush1.bf16.msra.mxu0 %v1495
    %2158 = vmatprep.subr.bf16.mxu0 0
    %2159 = vmatpush1.bf16.msra.mxu0 %v1496
    %2160 = vmatprep.subr.bf16.mxu0 0
    %2161 = vmatpush1.bf16.msra.mxu0 %v1497
    %2162 = vmatprep.mubr.bf16.mxu0 %v146
    %2163 = vmatmul.mubr.bf16.gmra.mrb[0].mxu0 %v145
    %v2164 = vpop.f32.mrb[0].mxu0
    %v2165 = vadd.f32 %v2125, %v2164
    %v2166 = vpop.f32.mrb[0].mxu0
    %v2167 = vpop.f32.mrb[0].mxu0
    %v2168 = vpop.f32.mrb[0].mxu0
    %2169 = vdwg.mxu0
    %v2170 = vrot.slane %v2165, 4
    %v2171 = vadd.f32 %v2165, %v2170
    %v2172 = vrot.slane %v2171, 2
    %v2173 = vadd.f32 %v2171, %v2172
    %v2174 = vrot.slane %v2173, 1
    %v2175 = vadd.f32 %v2173, %v2174
    %v2176 = vrcp.pop 8.0
    %v2177 = vmul.f32 %v2175, %v2176
    %v2178 = vsub.f32 %v2165, %v2177
    %v2179 = vmul.f32 %v2178, %v2178
    %v2180 = vrot.slane %v2179, 4
    %v2181 = vadd.f32 %v2179, %v2180
    %v2182 = vrot.slane %v2181, 2
    %v2183 = vadd.f32 %v2181, %v2182
    %v2184 = vrot.slane %v2183, 1
    %v2185 = vadd.f32 %v2183, %v2184
    %v2186 = vmul.f32 %v2185, %v2176
    %v2187 = vld [vmem:[%s3] sm:$0x1]
    %v2188 = vadd.f32 %v2186, 1e-05
    %v2189 = vrsqrt.pop %v2188
    %v2190 = vmul.f32 %v2187, %v2189
    %v2191 = vld [vmem:[%s4] sm:$0x1]
    %v2192 = vmul.f32 %v2177, %v2190
    %v2193 = vsub.f32 %v2191, %v2192
    %v2195 = vlaneseq
    %v2196 = vshrl.u32 %v2195, 7
    %v2197 = vsub.s32 0, %v2196
    %v2198 = vrot.slane %v2190, %v2197
    %v2200 = vmul.f32 %v2165, %v2198
    %v2202 = vlaneseq
    %v2203 = vshrl.u32 %v2202, 7
    %v2204 = vsub.s32 0, %v2203
    %v2205 = vrot.slane %v2193, %v2204
    %v2207 = vadd.f32 %v2200, %v2205
    %v2208 = vmax.f32 %v2207, 0.0
    %v2209 = vpack.c.bf16 %v2208, %v2208
    %v2210 = vld [vmem:[#allocation7] sm:$0xf]
    %v2211 = vld [vmem:[#allocation7 + $0x4] sm:$0xf]
    %v2212 = vld [vmem:[#allocation7 + $0x8] sm:$0xf]
    %v2213 = vld [vmem:[#allocation7 + $0xc] sm:$0xf]
    %v2214 = vld [vmem:[#allocation7 + $0x10] sm:$0xf]
    %v2215 = vld [vmem:[#allocation7 + $0x14] sm:$0xf]
    %v2216 = vld [vmem:[#allocation7 + $0x18] sm:$0xf]
    %v2217 = vld [vmem:[#allocation7 + $0x1c] sm:$0xf]
    %v2218 = vld [vmem:[#allocation7 + $0x20] sm:$0xf]
    %v2219 = vld [vmem:[#allocation7 + $0x24] sm:$0xf]
    %v2220 = vld [vmem:[#allocation7 + $0x28] sm:$0xf]
    %v2221 = vld [vmem:[#allocation7 + $0x2c] sm:$0xf]
    %v2222 = vld [vmem:[#allocation7 + $0x30] sm:$0xf]
    %v2223 = vld [vmem:[#allocation7 + $0x34] sm:$0xf]
    %v2224 = vld [vmem:[#allocation7 + $0x38] sm:$0xf]
    %v2225 = vld [vmem:[#allocation7 + $0x3c] sm:$0xf]
    %v2226 = vld [vmem:[%s6] sm:$0x1]
    %v2228 = vlaneseq
    %v2229 = vshrl.u32 %v2228, 7
    %v2230 = vsub.s32 0, %v2229
    %v2231 = vrot.slane %v2226, %v2230
    %v2249 = vunpack.c.l.b16 %v2210
    %v2250 = vunpack.c.l.b16 %v2211
    %v2251 = vunpack.c.l.b16 %v2212
    %v2252 = vunpack.c.l.b16 %v2213
    %v2253 = vunpack.c.l.b16 %v2214
    %v2254 = vunpack.c.l.b16 %v2215
    %v2255 = vunpack.c.l.b16 %v2216
    %v2256 = vunpack.c.l.b16 %v2217
    %v2257 = vunpack.c.l.b16 %v2218
    %v2258 = vunpack.c.l.b16 %v2219
    %v2259 = vunpack.c.l.b16 %v2220
    %v2260 = vunpack.c.l.b16 %v2221
    %v2261 = vunpack.c.l.b16 %v2222
    %v2262 = vunpack.c.l.b16 %v2223
    %v2263 = vunpack.c.l.b16 %v2224
    %v2264 = vunpack.c.l.b16 %v2225
    %v2265 = vpack.c.b16 %v2250, %v2249
    %v2266 = vpack.c.b16 %v2252, %v2251
    %v2267 = vpack.c.b16 %v2254, %v2253
    %v2268 = vpack.c.b16 %v2256, %v2255
    %v2269 = vpack.c.b16 %v2258, %v2257
    %v2270 = vpack.c.b16 %v2260, %v2259
    %v2271 = vpack.c.b16 %v2262, %v2261
    %v2272 = vpack.c.b16 %v2264, %v2263
    %2281 = vmatprep.subr.bf16.mxu0 0
    %2282 = vmatpush1.bf16.msra.mxu0 %v2265
    %2283 = vmatprep.subr.bf16.mxu0 0
    %2284 = vmatpush1.bf16.msra.mxu0 %v2266
    %2285 = vmatprep.subr.bf16.mxu0 0
    %2286 = vmatpush1.bf16.msra.mxu0 %v2267
    %2287 = vmatprep.subr.bf16.mxu0 0
    %2288 = vmatpush1.bf16.msra.mxu0 %v2268
    %2289 = vmatprep.subr.bf16.mxu0 0
    %2290 = vmatpush1.bf16.msra.mxu0 %v2269
    %2291 = vmatprep.subr.bf16.mxu0 0
    %2292 = vmatpush1.bf16.msra.mxu0 %v2270
    %2293 = vmatprep.subr.bf16.mxu0 0
    %2294 = vmatpush1.bf16.msra.mxu0 %v2271
    %2295 = vmatprep.subr.bf16.mxu0 0
    %2296 = vmatpush1.bf16.msra.mxu0 %v2272
    %2297 = vmatprep.subr.bf16.mxu0 0
    %2298 = vmatpush1.bf16.msra.mxu0 0
    %2299 = vmatprep.subr.bf16.mxu0 0
    %2300 = vmatpush1.bf16.msra.mxu0 0
    %2301 = vmatprep.subr.bf16.mxu0 0
    %2302 = vmatpush1.bf16.msra.mxu0 0
    %2303 = vmatprep.subr.bf16.mxu0 0
    %2304 = vmatpush1.bf16.msra.mxu0 0
    %2305 = vmatprep.subr.bf16.mxu0 0
    %2306 = vmatpush1.bf16.msra.mxu0 0
    %2307 = vmatprep.subr.bf16.mxu0 0
    %2308 = vmatpush1.bf16.msra.mxu0 0
    %2309 = vmatprep.subr.bf16.mxu0 0
    %2310 = vmatpush1.bf16.msra.mxu0 0
    %2311 = vmatprep.subr.bf16.mxu0 0
    %2312 = vmatpush1.bf16.msra.mxu0 0
    %2313 = vmatprep.mubr.bf16.mxu0 0
    %2314 = vmatmul.mubr.bf16.gmra.mrb[0].mxu0 %v2209
    %v2315 = vpop.f32.mrb[0].mxu0
    %v2316 = vadd.f32 %v2231, %v2315
    %v2317 = vpop.f32.mrb[0].mxu0
    %v2318 = vpop.f32.mrb[0].mxu0
    %v2319 = vpop.f32.mrb[0].mxu0
    %2320 = vdwg.mxu0
    %v2321 = vrot.slane %v2316, 4
    %v2322 = vadd.f32 %v2316, %v2321
    %v2323 = vrot.slane %v2322, 2
    %v2324 = vadd.f32 %v2322, %v2323
    %v2325 = vrot.slane %v2324, 1
    %v2326 = vadd.f32 %v2324, %v2325
    %v2327 = vmul.f32 %v2326, %v2176
    %v2328 = vsub.f32 %v2316, %v2327
    %v2329 = vmul.f32 %v2328, %v2328
    %v2330 = vrot.slane %v2329, 4
    %v2331 = vadd.f32 %v2329, %v2330
    %v2332 = vrot.slane %v2331, 2
    %v2333 = vadd.f32 %v2331, %v2332
    %v2334 = vrot.slane %v2333, 1
    %v2335 = vadd.f32 %v2333, %v2334
    %v2336 = vmul.f32 %v2335, %v2176
    %v2337 = vld [vmem:[%s7] sm:$0x1]
    %v2338 = vadd.f32 %v2336, 1e-05
    %v2339 = vrsqrt.pop %v2338
    %v2340 = vmul.f32 %v2337, %v2339
    %v2341 = vld [vmem:[%s8] sm:$0x1]
    %v2342 = vmul.f32 %v2327, %v2340
    %v2343 = vsub.f32 %v2341, %v2342
    %v2345 = vlaneseq
    %v2346 = vshrl.u32 %v2345, 7
    %v2347 = vsub.s32 0, %v2346
    %v2348 = vrot.slane %v2340, %v2347
    %v2350 = vmul.f32 %v2316, %v2348
    %v2352 = vlaneseq
    %v2353 = vshrl.u32 %v2352, 7
    %v2354 = vsub.s32 0, %v2353
    %v2355 = vrot.slane %v2343, %v2354
    %v2357 = vadd.f32 %v2350, %v2355
    %v2358 = vmax.f32 %v2357, 0.0
    %v2359 = vpack.c.bf16 %v2358, %v2358
    %v2360 = vld [vmem:[#allocation8] sm:$0xf]
    %v2361 = vld [vmem:[#allocation8 + $0x4] sm:$0xf]
    %v2362 = vld [vmem:[#allocation8 + $0x8] sm:$0xf]
    %v2363 = vld [vmem:[#allocation8 + $0xc] sm:$0xf]
    %v2364 = vld [vmem:[#allocation8 + $0x10] sm:$0xf]
    %v2365 = vld [vmem:[#allocation8 + $0x14] sm:$0xf]
    %v2366 = vld [vmem:[#allocation8 + $0x18] sm:$0xf]
    %v2367 = vld [vmem:[#allocation8 + $0x1c] sm:$0xf]
    %v2368 = vld [vmem:[#allocation8 + $0x20] sm:$0xf]
    %v2369 = vld [vmem:[#allocation8 + $0x24] sm:$0xf]
    %v2370 = vld [vmem:[#allocation8 + $0x28] sm:$0xf]
    %v2371 = vld [vmem:[#allocation8 + $0x2c] sm:$0xf]
    %v2372 = vld [vmem:[#allocation8 + $0x30] sm:$0xf]
    %v2373 = vld [vmem:[#allocation8 + $0x34] sm:$0xf]
    %v2374 = vld [vmem:[#allocation8 + $0x38] sm:$0xf]
    %v2375 = vld [vmem:[#allocation8 + $0x3c] sm:$0xf]
    %v2376 = vld [vmem:[%s10] sm:$0x1]
    %v2378 = vlaneseq
    %v2379 = vshrl.u32 %v2378, 7
    %v2380 = vsub.s32 0, %v2379
    %v2381 = vrot.slane %v2376, %v2380
    %v2399 = vunpack.c.l.b16 %v2360
    %v2400 = vunpack.c.l.b16 %v2361
    %v2401 = vunpack.c.l.b16 %v2362
    %v2402 = vunpack.c.l.b16 %v2363
    %v2403 = vunpack.c.l.b16 %v2364
    %v2404 = vunpack.c.l.b16 %v2365
    %v2405 = vunpack.c.l.b16 %v2366
    %v2406 = vunpack.c.l.b16 %v2367
    %v2407 = vunpack.c.l.b16 %v2368
    %v2408 = vunpack.c.l.b16 %v2369
    %v2409 = vunpack.c.l.b16 %v2370
    %v2410 = vunpack.c.l.b16 %v2371
    %v2411 = vunpack.c.l.b16 %v2372
    %v2412 = vunpack.c.l.b16 %v2373
    %v2413 = vunpack.c.l.b16 %v2374
    %v2414 = vunpack.c.l.b16 %v2375
    %v2415 = vpack.c.b16 %v2400, %v2399
    %v2416 = vpack.c.b16 %v2402, %v2401
    %v2417 = vpack.c.b16 %v2404, %v2403
    %v2418 = vpack.c.b16 %v2406, %v2405
    %v2419 = vpack.c.b16 %v2408, %v2407
    %v2420 = vpack.c.b16 %v2410, %v2409
    %v2421 = vpack.c.b16 %v2412, %v2411
    %v2422 = vpack.c.b16 %v2414, %v2413
    %2431 = vmatprep.subr.bf16.mxu0 0
    %2432 = vmatpush1.bf16.msra.mxu0 %v2415
    %2433 = vmatprep.subr.bf16.mxu0 0
    %2434 = vmatpush1.bf16.msra.mxu0 %v2416
    %2435 = vmatprep.subr.bf16.mxu0 0
    %2436 = vmatpush1.bf16.msra.mxu0 %v2417
    %2437 = vmatprep.subr.bf16.mxu0 0
    %2438 = vmatpush1.bf16.msra.mxu0 %v2418
    %2439 = vmatprep.subr.bf16.mxu0 0
    %2440 = vmatpush1.bf16.msra.mxu0 %v2419
    %2441 = vmatprep.subr.bf16.mxu0 0
    %2442 = vmatpush1.bf16.msra.mxu0 %v2420
    %2443 = vmatprep.subr.bf16.mxu0 0
    %2444 = vmatpush1.bf16.msra.mxu0 %v2421
    %2445 = vmatprep.subr.bf16.mxu0 0
    %2446 = vmatpush1.bf16.msra.mxu0 %v2422
    %2447 = vmatprep.subr.bf16.mxu0 0
    %2448 = vmatpush1.bf16.msra.mxu0 0
    %2449 = vmatprep.subr.bf16.mxu0 0
    %2450 = vmatpush1.bf16.msra.mxu0 0
    %2451 = vmatprep.subr.bf16.mxu0 0
    %2452 = vmatpush1.bf16.msra.mxu0 0
    %2453 = vmatprep.subr.bf16.mxu0 0
    %2454 = vmatpush1.bf16.msra.mxu0 0
    %2455 = vmatprep.subr.bf16.mxu0 0
    %2456 = vmatpush1.bf16.msra.mxu0 0
    %2457 = vmatprep.subr.bf16.mxu0 0
    %2458 = vmatpush1.bf16.msra.mxu0 0
    %2459 = vmatprep.subr.bf16.mxu0 0
    %2460 = vmatpush1.bf16.msra.mxu0 0
    %2461 = vmatprep.subr.bf16.mxu0 0
    %2462 = vmatpush1.bf16.msra.mxu0 0
    %2463 = vmatprep.mubr.bf16.mxu0 0
    %2464 = vmatmul.mubr.bf16.gmra.mrb[0].mxu0 %v2359
    %v2465 = vpop.f32.mrb[0].mxu0
    %v2466 = vadd.f32 %v2381, %v2465
    %v2467 = vpop.f32.mrb[0].mxu0
    %v2468 = vpop.f32.mrb[0].mxu0
    %v2469 = vpop.f32.mrb[0].mxu0
    %2470 = vdwg.mxu0
    %v2471 = vrot.slane %v2466, 4
    %v2472 = vadd.f32 %v2466, %v2471
    %v2473 = vrot.slane %v2472, 2
    %v2474 = vadd.f32 %v2472, %v2473
    %v2475 = vrot.slane %v2474, 1
    %v2476 = vadd.f32 %v2474, %v2475
    %v2477 = vmul.f32 %v2476, %v2176
    %v2478 = vsub.f32 %v2466, %v2477
    %v2479 = vmul.f32 %v2478, %v2478
    %v2480 = vrot.slane %v2479, 4
    %v2481 = vadd.f32 %v2479, %v2480
    %v2482 = vrot.slane %v2481, 2
    %v2483 = vadd.f32 %v2481, %v2482
    %v2484 = vrot.slane %v2483, 1
    %v2485 = vadd.f32 %v2483, %v2484
    %v2486 = vmul.f32 %v2485, %v2176
    %v2487 = vld [vmem:[%s11] sm:$0x1]
    %v2488 = vadd.f32 %v2486, 1e-05
    %v2489 = vrsqrt.pop %v2488
    %v2490 = vmul.f32 %v2487, %v2489
    %v2491 = vld [vmem:[%s12] sm:$0x1]
    %v2492 = vmul.f32 %v2477, %v2490
    %v2493 = vsub.f32 %v2491, %v2492
    %v2495 = vlaneseq
    %v2496 = vshrl.u32 %v2495, 7
    %v2497 = vsub.s32 0, %v2496
    %v2498 = vrot.slane %v2490, %v2497
    %v2500 = vmul.f32 %v2466, %v2498
    %v2502 = vlaneseq
    %v2503 = vshrl.u32 %v2502, 7
    %v2504 = vsub.s32 0, %v2503
    %v2505 = vrot.slane %v2493, %v2504
    %v2507 = vadd.f32 %v2500, %v2505
    %v2508 = vmax.f32 %v2507, 0.0
    %2509 = vst [vmem:[#allocation10] sm:$0xff] %v2508
    // Predicated region
    $region70: #{mynet_fc_forward.1} parent=1 // pred_check
      _
    $region71: #{mynet_fc_forward.1} parent=1 // pred_check_branch
      %2511 = sbr.rel (0) target = $region73
    $region72: #{mynet_fc_forward.1} parent=1 // pred_region
      %s2513 = ssub.s32 128, 128
      %2514 = vsyncadd [#allocation4], %s2513
      %s2516 = sshll.u32 [#allocation10], 4
      %s2517 = int_to_ptr.vmem [resolvable:$true] %s2516
      %2519 = dma.vmem_to_hbm [thread:$0]  %s2517, 128, %s13, [#allocation4]
    $region73: #{mynet_fc_forward.1} parent=1 // pred_fallthru
      _
    // Predicated region
    $region74: #{mynet_fc_forward.1} parent=1 // pred_check
      _
    $region75: #{mynet_fc_forward.1} parent=1 // pred_check_branch
      %2521 = sbr.rel (0) target = $region77
    $region76: #{mynet_fc_forward.1} parent=1 // pred_region
      %2522 = dma.done [#allocation4], 128
    $region77: #{mynet_fc_forward.1} parent=1 // pred_fallthru
      _
    %2523 = vsyncpa [#allocation3], 1
    %2524 = vsyncpa [#allocation6], 1
    %2525 = vsyncpa [#allocation9], 1
    %2526 = vsyncpa [#allocation4], 1

</llo_original>
